<compile_context>
chip_gen: v5e
topology: v5e:2x2
jax: 0.10.0
libtpu: 0.0.40
codegen_flags: <defaults>
</compile_context>

<pallas_src>
import numpy as np
import jax
import jax.numpy as jnp
from jax import lax
from jax.experimental import pallas as pl
from jax.experimental.pallas import tpu as pltpu

# ----------------------------- problem dims ---------------------------------
M = 2        # ensemble size
S = 8        # source length
H = 32       # hidden dim == embedding dim
V = 128      # target vocab size
T_PAD = 128  # max fused sequence length (lane width of the score output)

EOS_IDX = 2
UNK_IDX = 3
WORD_REWARD = 0.25
UNK_REWARD = -0.5

_DOT_PREC = lax.Precision.DEFAULT   # explicit: single-pass MXU matmul

# State lane layout (1, 3*M*H):
#   [feed_0 | h_0 | feed_1 | h_1 | c_0 | c_1]        (each chunk H lanes)


# ------------------------------- kernel -------------------------------------
def _ensemble_seq_kernel(
    tok_ref,                      # SMEM (T, 2) int32: [input_token, target_token] per step
    emb_ref,                      # (1, M, H)  embedding rows of this step's input token
    enc_ref,                      # (M, S, H)  encoder outputs
    enct_ref,                     # (M, H, S)  encoder outputs, transposed
    st0_ref,                      # (1, 3MH)   initial packed state
    wg_ref,                       # (3MH+1, 4MH)  block-diag gate weights + bias row
    watt_ref,                     # (2MH+1, MH)   block-diag attn-combine weights + bias row
    wout_ref,                     # (MH+2, MV)    block-diag out-proj + bias row + word-reward row
    score_ref,                    # OUT (1, T_PAD) per-step scores
    stout_ref,                    # OUT (1, 3MH)   final packed state
    state_scr,                    # VMEM scratch (1, 3MH)  -- carried across grid steps
    score_scr,                    # VMEM scratch (1, T_PAD)
):
    t = pl.program_id(0)
    n_steps = pl.num_programs(0)

    @pl.when(t == 0)
    def _init():
        state_scr[...] = st0_ref[...]
        score_scr[...] = jnp.zeros_like(score_scr)

    x = emb_ref[0]                                             # (M, H) embeddings

    # ---- LSTM gates: one block-diagonal MXU dot for both models -------------
    pieces = []
    for m in range(M):
        pieces.append(state_scr[:, 2 * H * m:2 * H * (m + 1)])  # [feed_m | h_m]
        pieces.append(x[m:m + 1, :])                             # x_m
    lhs_g = jnp.concatenate(pieces, axis=1)                      # (1, 3MH)
    gates = jnp.dot(lhs_g, wg_ref[0:3 * M * H, :],
                    preferred_element_type=jnp.float32, precision=_DOT_PREC)
    gates = gates + wg_ref[3 * M * H:3 * M * H + 1, :]           # (1, 4MH) = [i f g o]*M

    sig = jax.nn.sigmoid(gates)       # one full-width EUP pass (i, f, o lanes)
    tnh = jnp.tanh(gates)             # one full-width EUP pass (g lanes)

    c_new = []
    for m in range(M):
        o = 4 * H * m
        i_g = sig[:, o:o + H]
        f_g = sig[:, o + H:o + 2 * H]
        g_g = tnh[:, o + 2 * H:o + 3 * H]
        c_prev = state_scr[:, 2 * M * H + H * m:2 * M * H + H * (m + 1)]
        c_new.append(f_g * c_prev + i_g * g_g)
    c_all = jnp.concatenate(c_new, axis=1)                       # (1, MH)
    tanh_c = jnp.tanh(c_all)                                     # one EUP pass for both models

    # ---- per-model dot-product attention (encoders differ per model) --------
    h_new, ctx = [], []
    for m in range(M):
        o = 4 * H * m
        o_g = sig[:, o + 3 * H:o + 4 * H]
        h_m = o_g * tanh_c[:, H * m:H * (m + 1)]                 # (1, H)
        h_new.append(h_m)
        s = jnp.dot(h_m, enct_ref[m],
                    preferred_element_type=jnp.float32, precision=_DOT_PREC)   # (1, S)
        s = s - jnp.max(s, axis=1, keepdims=True)
        e = jnp.exp(s)
        attn = e / jnp.sum(e, axis=1, keepdims=True)             # exact reciprocal
        ctx.append(jnp.dot(attn, enc_ref[m],
                           preferred_element_type=jnp.float32, precision=_DOT_PREC))  # (1, H)

    # ---- attention combine: one block-diagonal dot for both models ----------
    pieces = []
    for m in range(M):
        pieces.append(ctx[m])
        pieces.append(h_new[m])
    lhs_a = jnp.concatenate(pieces, axis=1)                      # (1, 2MH)
    comb = jnp.tanh(
        jnp.dot(lhs_a, watt_ref[0:2 * M * H, :],
                preferred_element_type=jnp.float32, precision=_DOT_PREC)
        + watt_ref[2 * M * H:2 * M * H + 1, :])                  # (1, MH) = [comb_0 | comb_1]

    # ---- vocab projection (block-diag) + per-model log_softmax --------------
    logits = jnp.dot(comb, wout_ref[0:M * H, :],
                     preferred_element_type=jnp.float32, precision=_DOT_PREC)
    logits = logits + wout_ref[M * H:M * H + 1, :]               # (1, MV)
    lp_sum = jnp.zeros((1, V), jnp.float32)
    for m in range(M):
        lg = logits[:, V * m:V * (m + 1)]
        lmax = jnp.max(lg, axis=1, keepdims=True)
        lse = jnp.log(jnp.sum(jnp.exp(lg - lmax), axis=1, keepdims=True)) + lmax
        lp_sum = lp_sum + (lg - lse)
    avg = lp_sum * (1.0 / M)

    # ---- ensemble score at the known target token ---------------------------
    wr = wout_ref[M * H + 1:M * H + 2, 0:V]                      # (1, V) word rewards
    tgt = tok_ref[t, 1]
    lane_v = lax.broadcasted_iota(jnp.int32, (1, V), 1)
    step_score = jnp.sum(jnp.where(lane_v == tgt, avg + wr, 0.0),
                         axis=1, keepdims=True)                  # (1, 1)
    lane_t = lax.broadcasted_iota(jnp.int32, (1, T_PAD), 1)
    score_scr[...] = jnp.where(lane_t == t, step_score, score_scr[...])

    # ---- next decoder state: single full-width store ------------------------
    pieces = []
    for m in range(M):
        pieces.append(comb[:, H * m:H * (m + 1)])                # next input feed
        pieces.append(h_new[m])
    pieces.append(c_all)
    state_scr[...] = jnp.concatenate(pieces, axis=1)

    @pl.when(t == n_steps - 1)
    def _finalize():
        score_ref[...] = score_scr[...]
        stout_ref[...] = state_scr[...]


# ------------------------------ param packing --------------------------------
def pack_params(params):
    """One-time packing into block-diagonal, lane-dense weight slabs."""
    f32 = jnp.float32
    # gate slab: per-model K rows ordered [W_feed ; W_h ; W_x] to match the kernel
    # LHS ordering [input_feed, h, x]; models placed block-diagonally on K and N.
    wg = jnp.zeros((3 * M * H, 4 * M * H), f32)
    bg = []
    for m in range(M):
        w_feed = params["w_ih_t"][m, H:2 * H, :]
        w_x = params["w_ih_t"][m, 0:H, :]
        w_h = params["w_hh_t"][m]
        blk = jnp.concatenate([w_feed, w_h, w_x], axis=0)                    # (3H, 4H)
        wg = wg.at[3 * H * m:3 * H * (m + 1), 4 * H * m:4 * H * (m + 1)].set(blk)
        bg.append(params["b_ih"][m, 0] + params["b_hh"][m, 0])
    w_gate = jnp.concatenate([wg, jnp.concatenate(bg)[None, :]], axis=0)     # (3MH+1, 4MH)

    wa = jnp.zeros((2 * M * H, M * H), f32)
    ba = []
    for m in range(M):
        wa = wa.at[2 * H * m:2 * H * (m + 1), H * m:H * (m + 1)].set(params["w_att_t"][m])
        ba.append(params["b_att"][m, 0])
    w_att = jnp.concatenate([wa, jnp.concatenate(ba)[None, :]], axis=0)      # (2MH+1, MH)

    wo = jnp.zeros((M * H, M * V), f32)
    bo = []
    for m in range(M):
        wo = wo.at[H * m:H * (m + 1), V * m:V * (m + 1)].set(params["w_out_t"][m])
        bo.append(params["b_out"][m, 0])
    wr = jnp.concatenate([params["word_rewards"][0]] * M)[None, :]
    w_out = jnp.concatenate([wo, jnp.concatenate(bo)[None, :], wr], axis=0)  # (MH+2, MV)

    embed_t = jnp.transpose(params["embed"], (1, 0, 2))                      # (V, M, H)
    return {"embed_t": embed_t, "w_gate": w_gate, "w_att": w_att, "w_out": w_out}


# ------------------------------- wrappers -------------------------------------
def known_output_decoder_sequence(tokens, encoder_outputs, prev_hiddens,
                                  prev_cells, prev_input_feeds, packed):
    """T teacher-forced KnownOutputDecoderStepEnsemble steps fused into one
    pallas_call (grid over timesteps; weights resident; state carried in VMEM).
    Returns (per-step scores (T,), enc_out_0..enc_out_{M-1},
             [h_i, c_i, input_feed_i] per model at the final step)."""
    T = tokens.shape[0]
    assert 1 <= T <= T_PAD

    # built ONCE per sequence (not per step)
    enc = jnp.stack([e[:, 0, :] for e in encoder_outputs])                   # (M, S, H)
    enc_t = jnp.transpose(enc, (0, 2, 1))                                    # (M, H, S)
    state0 = jnp.concatenate(
        [jnp.concatenate([prev_input_feeds[m], prev_hiddens[m]], axis=1) for m in range(M)]
        + [prev_cells[m] for m in range(M)], axis=1)                         # (1, 3MH)

    grid_spec = pltpu.PrefetchScalarGridSpec(
        num_scalar_prefetch=1,
        grid=(T,),
        in_specs=[
            pl.BlockSpec((1, M, H), lambda t, tok: (tok[t, 0], 0, 0)),       # embed row gather
            pl.BlockSpec((M, S, H), lambda t, tok: (0, 0, 0)),               # enc      (resident)
            pl.BlockSpec((M, H, S), lambda t, tok: (0, 0, 0)),               # enc^T    (resident)
            pl.BlockSpec((1, 3 * M * H), lambda t, tok: (0, 0)),             # state0   (resident)
            pl.BlockSpec((3 * M * H + 1, 4 * M * H), lambda t, tok: (0, 0)),  # gate slab
            pl.BlockSpec((2 * M * H + 1, M * H), lambda t, tok: (0, 0)),      # attn slab
            pl.BlockSpec((M * H + 2, M * V), lambda t, tok: (0, 0)),          # out slab
        ],
        out_specs=[
            pl.BlockSpec((1, T_PAD), lambda t, tok: (0, 0)),                  # scores (lane-dense)
            pl.BlockSpec((1, 3 * M * H), lambda t, tok: (0, 0)),              # final state
        ],
        scratch_shapes=[
            pltpu.VMEM((1, 3 * M * H), jnp.float32),                          # carried state
            pltpu.VMEM((1, T_PAD), jnp.float32),                              # score accumulator
        ],
    )

    scores_pad, state_out = pl.pallas_call(
        _ensemble_seq_kernel,
        out_shape=(jax.ShapeDtypeStruct((1, T_PAD), jnp.float32),
                   jax.ShapeDtypeStruct((1, 3 * M * H), jnp.float32)),
        grid_spec=grid_spec,
        compiler_params=pltpu.CompilerParams(dimension_semantics=("arbitrary",)),
    )(tokens, packed["embed_t"], enc, enc_t, state0,
      packed["w_gate"], packed["w_att"], packed["w_out"])

    scores = scores_pad[0, :T]
    outputs = [scores]
    outputs.extend(encoder_outputs)                          # fixed_input_i passthrough
    for m in range(M):
        h_m = state_out[:, 2 * H * m + H:2 * H * (m + 1)]
        c_m = state_out[:, 2 * M * H + H * m:2 * M * H + H * (m + 1)]
        f_m = state_out[:, 2 * H * m:2 * H * m + H]
        outputs.extend([h_m, c_m, f_m])
    return tuple(outputs)


def known_output_decoder_step_ensemble(input_token, target_token, timestep,
                                       encoder_outputs, prev_hiddens, prev_cells,
                                       prev_input_feeds, packed):
    """Module-faithful single-step interface (fused kernel with T=1)."""
    del timestep  # present in the module signature but unused by the forward pass
    tokens = jnp.stack([jnp.asarray(input_token, jnp.int32),
                        jnp.asarray(target_token, jnp.int32)])[None, :]
    return known_output_decoder_sequence(tokens, encoder_outputs, prev_hiddens,
                                         prev_cells, prev_input_feeds, packed)


# --------------------------- pure-JAX reference ------------------------------
def _reference_sequence(tokens, encoder_outputs, prev_hiddens, prev_cells,
                        prev_input_feeds, params):
    h = [prev_hiddens[m][0] for m in range(M)]
    c = [prev_cells[m][0] for m in range(M)]
    feed = [prev_input_feeds[m][0] for m in range(M)]
    scores = []
    for t in range(int(tokens.shape[0])):
        in_tok, tgt = tokens[t, 0], tokens[t, 1]
        lp_sum = jnp.zeros((V,), jnp.float32)
        nh, nc, nf = [], [], []
        for m in range(M):
            enc = encoder_outputs[m][:, 0, :]
            x = params["embed"][m, in_tok]
            xin = jnp.concatenate([x, feed[m]])
            gates = (xin @ params["w_ih_t"][m] + params["b_ih"][m, 0]
                     + h[m] @ params["w_hh_t"][m] + params["b_hh"][m, 0])
            i_g = jax.nn.sigmoid(gates[:H]); f_g = jax.nn.sigmoid(gates[H:2 * H])
            g_g = jnp.tanh(gates[2 * H:3 * H]); o_g = jax.nn.sigmoid(gates[3 * H:])
            c_n = f_g * c[m] + i_g * g_g
            h_n = o_g * jnp.tanh(c_n)
            attn = jax.nn.softmax(enc @ h_n)
            ctx = attn @ enc
            comb = jnp.tanh(jnp.concatenate([ctx, h_n]) @ params["w_att_t"][m]
                            + params["b_att"][m, 0])
            logits = comb @ params["w_out_t"][m] + params["b_out"][m, 0]
            lp_sum = lp_sum + jax.nn.log_softmax(logits)
            nh.append(h_n); nc.append(c_n); nf.append(comb)
        h, c, feed = nh, nc, nf
        avg = lp_sum / M
        scores.append(avg[tgt] + params["word_rewards"][0, tgt])
    return (jnp.stack(scores),
            [h[m][None] for m in range(M)],
            [c[m][None] for m in range(M)],
            [feed[m][None] for m in range(M)])


# --------------------------------- main ---------------------------------------
if __name__ == "__main__":
    key = jax.random.PRNGKey(0)
    ks = jax.random.split(key, 24)

    def nrm(k, shape, scale=0.1):
        return (scale * jax.random.normal(k, shape)).astype(jnp.float32)

    params = {
        "embed":   nrm(ks[0], (M, V, H)),
        "w_ih_t":  nrm(ks[1], (M, 2 * H, 4 * H)),
        "b_ih":    nrm(ks[2], (M, 1, 4 * H)),
        "w_hh_t":  nrm(ks[3], (M, H, 4 * H)),
        "b_hh":    nrm(ks[4], (M, 1, 4 * H)),
        "w_att_t": nrm(ks[5], (M, 2 * H, H)),
        "b_att":   nrm(ks[6], (M, 1, H)),
        "w_out_t": nrm(ks[7], (M, H, V)),
        "b_out":   nrm(ks[8], (M, 1, V)),
    }
    wr = jnp.full((V,), WORD_REWARD, jnp.float32)
    wr = wr.at[EOS_IDX].set(0.0).at[UNK_IDX].set(WORD_REWARD + UNK_REWARD)
    params["word_rewards"] = wr[None, :]

    packed = pack_params(params)   # packed once, reused for every sequence

    encoder_outputs = [nrm(ks[9 + m], (S, 1, H), 1.0) for m in range(M)]
    prev_hiddens = [nrm(ks[11 + m], (1, H), 0.5) for m in range(M)]
    prev_cells = [nrm(ks[13 + m], (1, H), 0.5) for m in range(M)]
    prev_input_feeds = [nrm(ks[15 + m], (1, H), 0.5) for m in range(M)]

    T = 8
    tokens = jax.random.randint(ks[17], (T, 2), 0, V, dtype=jnp.int32)

    seq_fn = jax.jit(known_output_decoder_sequence)
    outputs = seq_fn(tokens, encoder_outputs, prev_hiddens, prev_cells,
                     prev_input_feeds, packed)
    jax.block_until_ready(outputs)

    ref_scores, ref_h, ref_c, ref_f = _reference_sequence(
        tokens, encoder_outputs, prev_hiddens, prev_cells, prev_input_feeds, params)

    np.testing.assert_allclose(np.asarray(outputs[0]), np.asarray(ref_scores),
                               rtol=2e-3, atol=2e-3)
    for m in range(M):
        base = 1 + M + 3 * m
        np.testing.assert_allclose(np.asarray(outputs[base + 0]),
                                   np.asarray(ref_h[m]), rtol=2e-3, atol=2e-3)
        np.testing.assert_allclose(np.asarray(outputs[base + 1]),
                                   np.asarray(ref_c[m]), rtol=2e-3, atol=2e-3)
        np.testing.assert_allclose(np.asarray(outputs[base + 2]),
                                   np.asarray(ref_f[m]), rtol=2e-3, atol=2e-3)

    # module-faithful single-step interface (T=1 grid) also works
    step_fn = jax.jit(known_output_decoder_step_ensemble)
    step_out = step_fn(tokens[0, 0], tokens[0, 1], jnp.array(0, jnp.int32),
                       encoder_outputs, prev_hiddens, prev_cells,
                       prev_input_feeds, packed)
    jax.block_until_ready(step_out)
    np.testing.assert_allclose(np.asarray(step_out[0]), np.asarray(ref_scores[:1]),
                               rtol=2e-3, atol=2e-3)

    print("KERNEL_OK")
</pallas_src>

<mosaic_0001>
module attributes {stable_mosaic.version = 11 : i64} {
  func.func @_ensemble_seq_kernel(%arg0: i32, %arg1: memref<8x2xi32, #tpu.memory_space<smem>>, %arg2: memref<1x2x32xf32, #tpu.memory_space<vmem>>, %arg3: memref<2x8x32xf32, #tpu.memory_space<vmem>>, %arg4: memref<2x32x8xf32, #tpu.memory_space<vmem>>, %arg5: memref<1x192xf32, #tpu.memory_space<vmem>>, %arg6: memref<193x256xf32, #tpu.memory_space<vmem>>, %arg7: memref<129x64xf32, #tpu.memory_space<vmem>>, %arg8: memref<66x256xf32, #tpu.memory_space<vmem>>, %arg9: memref<1x128xf32, #tpu.memory_space<vmem>>, %arg10: memref<1x192xf32, #tpu.memory_space<vmem>>, %arg11: memref<1x192xf32, #tpu.memory_space<vmem>>, %arg12: memref<1x128xf32, #tpu.memory_space<vmem>>) attributes {dimension_semantics = [#tpu.dimension_semantics<arbitrary>], iteration_bounds = array<i64: 8>, scalar_prefetch = 1 : i64, scratch_operands = 2 : i64, tpu.core_type = #tpu.core_type<tc>, window_params = [{transform_indices = @transform_0, window_bounds = array<i64: 1, 2, 32>}, {pipeline_mode = #tpu.pipeline_mode<synchronous>, transform_indices = @transform_1, window_bounds = array<i64: 2, 8, 32>}, {pipeline_mode = #tpu.pipeline_mode<synchronous>, transform_indices = @transform_2, window_bounds = array<i64: 2, 32, 8>}, {pipeline_mode = #tpu.pipeline_mode<synchronous>, transform_indices = @transform_3, window_bounds = array<i64: 1, 192>}, {pipeline_mode = #tpu.pipeline_mode<synchronous>, transform_indices = @transform_4, window_bounds = array<i64: 193, 256>}, {pipeline_mode = #tpu.pipeline_mode<synchronous>, transform_indices = @transform_5, window_bounds = array<i64: 129, 64>}, {pipeline_mode = #tpu.pipeline_mode<synchronous>, transform_indices = @transform_6, window_bounds = array<i64: 66, 256>}, {pipeline_mode = #tpu.pipeline_mode<synchronous>, transform_indices = @transform_7, window_bounds = array<i64: 1, 128>}, {pipeline_mode = #tpu.pipeline_mode<synchronous>, transform_indices = @transform_8, window_bounds = array<i64: 1, 192>}]} {
    %c0_i32 = arith.constant 0 : i32
    %0 = arith.cmpi eq, %arg0, %c0_i32 : i32
    %1 = arith.extui %0 : i1 to i32
    %c0_i32_0 = arith.constant 0 : i32
    %2 = arith.cmpi ne, %1, %c0_i32_0 : i32
    scf.if %2 {
      %c0_58 = arith.constant 0 : index
      %c0_59 = arith.constant 0 : index
      %137 = vector.load %arg5[%c0_58, %c0_59] : memref<1x192xf32, #tpu.memory_space<vmem>>, vector<1x192xf32>
      %c0_60 = arith.constant 0 : index
      %c0_61 = arith.constant 0 : index
      %138 = vector.load %arg11[%c0_60, %c0_61] : memref<1x192xf32, #tpu.memory_space<vmem>>, vector<1x192xf32>
      tpu.vector_store %arg11[%c0_60, %c0_61], %137 {strides = array<i32>} : memref<1x192xf32, #tpu.memory_space<vmem>>, vector<1x192xf32>,
      %cst_62 = arith.constant 0.000000e+00 : f32
      %139 = vector.broadcast %cst_62 : f32 to vector<1x128xf32>
      %c0_63 = arith.constant 0 : index
      %c0_64 = arith.constant 0 : index
      %140 = vector.load %arg12[%c0_63, %c0_64] : memref<1x128xf32, #tpu.memory_space<vmem>>, vector<1x128xf32>
      tpu.vector_store %arg12[%c0_63, %c0_64], %139 {strides = array<i32>} : memref<1x128xf32, #tpu.memory_space<vmem>>, vector<1x128xf32>,
    } else {
    }
    %c0 = arith.constant 0 : index
    %c0_1 = arith.constant 0 : index
    %c0_2 = arith.constant 0 : index
    %3 = vector.load %arg2[%c0, %c0_1, %c0_2] : memref<1x2x32xf32, #tpu.memory_space<vmem>>, vector<1x2x32xf32>
    %4 = vector.shape_cast %3 : vector<1x2x32xf32> to vector<2x32xf32>
    %c0_3 = arith.constant 0 : index
    %c0_4 = arith.constant 0 : index
    %5 = vector.load %arg11[%c0_3, %c0_4] : memref<1x192xf32, #tpu.memory_space<vmem>>, vector<1x64xf32>
    %6 = vector.extract_strided_slice %4 {offsets = [0, 0], sizes = [1, 32], strides = [1, 1]} : vector<2x32xf32> to vector<1x32xf32>
    %c0_5 = arith.constant 0 : index
    %c64 = arith.constant 64 : index
    %7 = vector.load %arg11[%c0_5, %c64] : memref<1x192xf32, #tpu.memory_space<vmem>>, vector<1x64xf32>
    %8 = vector.extract_strided_slice %4 {offsets = [1, 0], sizes = [1, 32], strides = [1, 1]} : vector<2x32xf32> to vector<1x32xf32>
    %9 = tpu.concatenate %5, %6, %7, %8 in 1 : vector<1x64xf32>, vector<1x32xf32>, vector<1x64xf32>, vector<1x32xf32> -> vector<1x192xf32>
    %c0_6 = arith.constant 0 : index
    %c0_7 = arith.constant 0 : index
    %10 = vector.load %arg6[%c0_6, %c0_7] : memref<193x256xf32, #tpu.memory_space<vmem>>, vector<192x256xf32>
    %cst = arith.constant dense<0.000000e+00> : vector<1x256xf32>
    %11 = tpu.matmul %9, %10, %cst {dimension_numbers = #tpu.dot_dimension_numbers<[1], [0], [0], [1], [0, 0, 1, 1], [], []>} : vector<1x192xf32>, vector<192x256xf32>, vector<1x256xf32> -> vector<1x256xf32>
    %c192 = arith.constant 192 : index
    %c0_8 = arith.constant 0 : index
    %12 = vector.load %arg6[%c192, %c0_8] : memref<193x256xf32, #tpu.memory_space<vmem>>, vector<1x256xf32>
    %13 = arith.addf %11, %12 : vector<1x256xf32>
    %14 = arith.negf %13 : vector<1x256xf32>
    %15 = math.exp %14 : vector<1x256xf32>
    %cst_9 = arith.constant 1.000000e+00 : f32
    %16 = vector.broadcast %cst_9 : f32 to vector<1x256xf32>
    %17 = arith.addf %16, %15 : vector<1x256xf32>
    %18 = arith.divf %16, %17 : vector<1x256xf32>
    %19 = math.tanh %13 : vector<1x256xf32>
    %20 = vector.extract_strided_slice %18 {offsets = [0, 0], sizes = [1, 32], strides = [1, 1]} : vector<1x256xf32> to vector<1x32xf32>
    %21 = vector.extract_strided_slice %18 {offsets = [0, 32], sizes = [1, 32], strides = [1, 1]} : vector<1x256xf32> to vector<1x32xf32>
    %22 = vector.extract_strided_slice %19 {offsets = [0, 64], sizes = [1, 32], strides = [1, 1]} : vector<1x256xf32> to vector<1x32xf32>
    %c0_10 = arith.constant 0 : index
    %c128 = arith.constant 128 : index
    %23 = vector.load %arg11[%c0_10, %c128] : memref<1x192xf32, #tpu.memory_space<vmem>>, vector<1x32xf32>
    %24 = arith.mulf %21, %23 : vector<1x32xf32>
    %25 = arith.mulf %20, %22 : vector<1x32xf32>
    %26 = arith.addf %24, %25 : vector<1x32xf32>
    %27 = vector.extract_strided_slice %18 {offsets = [0, 128], sizes = [1, 32], strides = [1, 1]} : vector<1x256xf32> to vector<1x32xf32>
    %28 = vector.extract_strided_slice %18 {offsets = [0, 160], sizes = [1, 32], strides = [1, 1]} : vector<1x256xf32> to vector<1x32xf32>
    %29 = vector.extract_strided_slice %19 {offsets = [0, 192], sizes = [1, 32], strides = [1, 1]} : vector<1x256xf32> to vector<1x32xf32>
    %c0_11 = arith.constant 0 : index
    %c160 = arith.constant 160 : index
    %30 = vector.load %arg11[%c0_11, %c160] : memref<1x192xf32, #tpu.memory_space<vmem>>, vector<1x32xf32>
    %31 = arith.mulf %28, %30 : vector<1x32xf32>
    %32 = arith.mulf %27, %29 : vector<1x32xf32>
    %33 = arith.addf %31, %32 : vector<1x32xf32>
    %34 = tpu.concatenate %26, %33 in 1 : vector<1x32xf32>, vector<1x32xf32> -> vector<1x64xf32>
    %35 = math.tanh %34 : vector<1x64xf32>
    %36 = vector.extract_strided_slice %18 {offsets = [0, 96], sizes = [1, 32], strides = [1, 1]} : vector<1x256xf32> to vector<1x32xf32>
    %37 = vector.extract_strided_slice %35 {offsets = [0, 0], sizes = [1, 32], strides = [1, 1]} : vector<1x64xf32> to vector<1x32xf32>
    %38 = arith.mulf %36, %37 : vector<1x32xf32>
    %c0_12 = arith.constant 0 : index
    %c0_13 = arith.constant 0 : index
    %c0_14 = arith.constant 0 : index
    %39 = vector.load %arg4[%c0_12, %c0_13, %c0_14] : memref<2x32x8xf32, #tpu.memory_space<vmem>>, vector<1x32x8xf32>
    %40 = vector.shape_cast %39 : vector<1x32x8xf32> to vector<32x8xf32>
    %cst_15 = arith.constant dense<0.000000e+00> : vector<1x8xf32>
    %41 = tpu.matmul %38, %40, %cst_15 {dimension_numbers = #tpu.dot_dimension_numbers<[1], [0], [0], [1], [0, 0, 1, 1], [], []>} : vector<1x32xf32>, vector<32x8xf32>, vector<1x8xf32> -> vector<1x8xf32>
    %cst_16 = arith.constant dense<0xFF800000> : vector<1xf32>
    %42 = vector.multi_reduction <maximumf>, %41, %cst_16 [1] : vector<1x8xf32> to vector<1xf32>
    %43 = vector.shape_cast %42 : vector<1xf32> to vector<1x1xf32>
    %44 = vector.broadcast %43 : vector<1x1xf32> to vector<1x8xf32>
    %45 = arith.subf %41, %44 : vector<1x8xf32>
    %46 = math.exp %45 : vector<1x8xf32>
    %cst_17 = arith.constant dense<0.000000e+00> : vector<1xf32>
    %47 = vector.multi_reduction <add>, %46, %cst_17 [1] : vector<1x8xf32> to vector<1xf32>
    %48 = vector.shape_cast %47 : vector<1xf32> to vector<1x1xf32>
    %49 = vector.broadcast %48 : vector<1x1xf32> to vector<1x8xf32>
    %50 = arith.divf %46, %49 : vector<1x8xf32>
    %c0_18 = arith.constant 0 : index
    %c0_19 = arith.constant 0 : index
    %c0_20 = arith.constant 0 : index
    %51 = vector.load %arg3[%c0_18, %c0_19, %c0_20] : memref<2x8x32xf32, #tpu.memory_space<vmem>>, vector<1x8x32xf32>
    %52 = vector.shape_cast %51 : vector<1x8x32xf32> to vector<8x32xf32>
    %cst_21 = arith.constant dense<0.000000e+00> : vector<1x32xf32>
    %53 = tpu.matmul %50, %52, %cst_21 {dimension_numbers = #tpu.dot_dimension_numbers<[1], [0], [0], [1], [0, 0, 1, 1], [], []>} : vector<1x8xf32>, vector<8x32xf32>, vector<1x32xf32> -> vector<1x32xf32>
    %54 = vector.extract_strided_slice %18 {offsets = [0, 224], sizes = [1, 32], strides = [1, 1]} : vector<1x256xf32> to vector<1x32xf32>
    %55 = vector.extract_strided_slice %35 {offsets = [0, 32], sizes = [1, 32], strides = [1, 1]} : vector<1x64xf32> to vector<1x32xf32>
    %56 = arith.mulf %54, %55 : vector<1x32xf32>
    %c1 = arith.constant 1 : index
    %c0_22 = arith.constant 0 : index
    %c0_23 = arith.constant 0 : index
    %57 = vector.load %arg4[%c1, %c0_22, %c0_23] : memref<2x32x8xf32, #tpu.memory_space<vmem>>, vector<1x32x8xf32>
    %58 = vector.shape_cast %57 : vector<1x32x8xf32> to vector<32x8xf32>
    %cst_24 = arith.constant dense<0.000000e+00> : vector<1x8xf32>
    %59 = tpu.matmul %56, %58, %cst_24 {dimension_numbers = #tpu.dot_dimension_numbers<[1], [0], [0], [1], [0, 0, 1, 1], [], []>} : vector<1x32xf32>, vector<32x8xf32>, vector<1x8xf32> -> vector<1x8xf32>
    %cst_25 = arith.constant dense<0xFF800000> : vector<1xf32>
    %60 = vector.multi_reduction <maximumf>, %59, %cst_25 [1] : vector<1x8xf32> to vector<1xf32>
    %61 = vector.shape_cast %60 : vector<1xf32> to vector<1x1xf32>
    %62 = vector.broadcast %61 : vector<1x1xf32> to vector<1x8xf32>
    %63 = arith.subf %59, %62 : vector<1x8xf32>
    %64 = math.exp %63 : vector<1x8xf32>
    %cst_26 = arith.constant dense<0.000000e+00> : vector<1xf32>
    %65 = vector.multi_reduction <add>, %64, %cst_26 [1] : vector<1x8xf32> to vector<1xf32>
    %66 = vector.shape_cast %65 : vector<1xf32> to vector<1x1xf32>
    %67 = vector.broadcast %66 : vector<1x1xf32> to vector<1x8xf32>
    %68 = arith.divf %64, %67 : vector<1x8xf32>
    %c1_27 = arith.constant 1 : index
    %c0_28 = arith.constant 0 : index
    %c0_29 = arith.constant 0 : index
    %69 = vector.load %arg3[%c1_27, %c0_28, %c0_29] : memref<2x8x32xf32, #tpu.memory_space<vmem>>, vector<1x8x32xf32>
    %70 = vector.shape_cast %69 : vector<1x8x32xf32> to vector<8x32xf32>
    %cst_30 = arith.constant dense<0.000000e+00> : vector<1x32xf32>
    %71 = tpu.matmul %68, %70, %cst_30 {dimension_numbers = #tpu.dot_dimension_numbers<[1], [0], [0], [1], [0, 0, 1, 1], [], []>} : vector<1x8xf32>, vector<8x32xf32>, vector<1x32xf32> -> vector<1x32xf32>
    %72 = tpu.concatenate %53, %38, %71, %56 in 1 : vector<1x32xf32>, vector<1x32xf32>, vector<1x32xf32>, vector<1x32xf32> -> vector<1x128xf32>
    %c0_31 = arith.constant 0 : index
    %c0_32 = arith.constant 0 : index
    %73 = vector.load %arg7[%c0_31, %c0_32] : memref<129x64xf32, #tpu.memory_space<vmem>>, vector<128x64xf32>
    %cst_33 = arith.constant dense<0.000000e+00> : vector<1x64xf32>
    %74 = tpu.matmul %72, %73, %cst_33 {dimension_numbers = #tpu.dot_dimension_numbers<[1], [0], [0], [1], [0, 0, 1, 1], [], []>} : vector<1x128xf32>, vector<128x64xf32>, vector<1x64xf32> -> vector<1x64xf32>
    %c128_34 = arith.constant 128 : index
    %c0_35 = arith.constant 0 : index
    %75 = vector.load %arg7[%c128_34, %c0_35] : memref<129x64xf32, #tpu.memory_space<vmem>>, vector<1x64xf32>
    %76 = arith.addf %74, %75 : vector<1x64xf32>
    %77 = math.tanh %76 : vector<1x64xf32>
    %c0_36 = arith.constant 0 : index
    %c0_37 = arith.constant 0 : index
    %78 = vector.load %arg8[%c0_36, %c0_37] : memref<66x256xf32, #tpu.memory_space<vmem>>, vector<64x256xf32>
    %cst_38 = arith.constant dense<0.000000e+00> : vector<1x256xf32>
    %79 = tpu.matmul %77, %78, %cst_38 {dimension_numbers = #tpu.dot_dimension_numbers<[1], [0], [0], [1], [0, 0, 1, 1], [], []>} : vector<1x64xf32>, vector<64x256xf32>, vector<1x256xf32> -> vector<1x256xf32>
    %c64_39 = arith.constant 64 : index
    %c0_40 = arith.constant 0 : index
    %80 = vector.load %arg8[%c64_39, %c0_40] : memref<66x256xf32, #tpu.memory_space<vmem>>, vector<1x256xf32>
    %81 = arith.addf %79, %80 : vector<1x256xf32>
    %cst_41 = arith.constant 0.000000e+00 : f32
    %82 = vector.broadcast %cst_41 : f32 to vector<1x128xf32>
    %83 = vector.extract_strided_slice %81 {offsets = [0, 0], sizes = [1, 128], strides = [1, 1]} : vector<1x256xf32> to vector<1x128xf32>
    %cst_42 = arith.constant dense<0xFF800000> : vector<1xf32>
    %84 = vector.multi_reduction <maximumf>, %83, %cst_42 [1] : vector<1x128xf32> to vector<1xf32>
    %85 = vector.shape_cast %84 : vector<1xf32> to vector<1x1xf32>
    %86 = vector.broadcast %85 : vector<1x1xf32> to vector<1x128xf32>
    %87 = arith.subf %83, %86 : vector<1x128xf32>
    %88 = math.exp %87 : vector<1x128xf32>
    %cst_43 = arith.constant dense<0.000000e+00> : vector<1xf32>
    %89 = vector.multi_reduction <add>, %88, %cst_43 [1] : vector<1x128xf32> to vector<1xf32>
    %90 = vector.shape_cast %89 : vector<1xf32> to vector<1x1xf32>
    %91 = math.log %90 : vector<1x1xf32>
    %92 = arith.addf %91, %85 : vector<1x1xf32>
    %93 = vector.broadcast %92 : vector<1x1xf32> to vector<1x128xf32>
    %94 = arith.subf %83, %93 : vector<1x128xf32>
    %95 = arith.addf %82, %94 : vector<1x128xf32>
    %96 = vector.extract_strided_slice %81 {offsets = [0, 128], sizes = [1, 128], strides = [1, 1]} : vector<1x256xf32> to vector<1x128xf32>
    %cst_44 = arith.constant dense<0xFF800000> : vector<1xf32>
    %97 = vector.multi_reduction <maximumf>, %96, %cst_44 [1] : vector<1x128xf32> to vector<1xf32>
    %98 = vector.shape_cast %97 : vector<1xf32> to vector<1x1xf32>
    %99 = vector.broadcast %98 : vector<1x1xf32> to vector<1x128xf32>
    %100 = arith.subf %96, %99 : vector<1x128xf32>
    %101 = math.exp %100 : vector<1x128xf32>
    %cst_45 = arith.constant dense<0.000000e+00> : vector<1xf32>
    %102 = vector.multi_reduction <add>, %101, %cst_45 [1] : vector<1x128xf32> to vector<1xf32>
    %103 = vector.shape_cast %102 : vector<1xf32> to vector<1x1xf32>
    %104 = math.log %103 : vector<1x1xf32>
    %105 = arith.addf %104, %98 : vector<1x1xf32>
    %106 = vector.broadcast %105 : vector<1x1xf32> to vector<1x128xf32>
    %107 = arith.subf %96, %106 : vector<1x128xf32>
    %108 = arith.addf %95, %107 : vector<1x128xf32>
    %cst_46 = arith.constant 5.000000e-01 : f32
    %109 = vector.broadcast %cst_46 : f32 to vector<1x128xf32>
    %110 = arith.mulf %108, %109 : vector<1x128xf32>
    %c65 = arith.constant 65 : index
    %c0_47 = arith.constant 0 : index
    %111 = vector.load %arg8[%c65, %c0_47] : memref<66x256xf32, #tpu.memory_space<vmem>>, vector<1x128xf32>
    %112 = arith.index_cast %arg0 : i32 to index
    %c1_48 = arith.constant 1 : index
    %113 = memref.load %arg1[%112, %c1_48] : memref<8x2xi32, #tpu.memory_space<smem>>
    %114 = tpu.iota {dimensions = array<i32: 1>} : vector<1x128xi32>
    %115 = vector.broadcast %113 : i32 to vector<1x128xi32>
    %116 = arith.cmpi eq, %114, %115 : vector<1x128xi32>
    %117 = arith.addf %110, %111 : vector<1x128xf32>
    %cst_49 = arith.constant 0.000000e+00 : f32
    %118 = vector.broadcast %cst_49 : f32 to vector<1x128xf32>
    %119 = arith.select %116, %117, %118 : vector<1x128xi1>, vector<1x128xf32>
    %cst_50 = arith.constant dense<0.000000e+00> : vector<1xf32>
    %120 = vector.multi_reduction <add>, %119, %cst_50 [1] : vector<1x128xf32> to vector<1xf32>
    %121 = vector.shape_cast %120 : vector<1xf32> to vector<1x1xf32>
    %122 = tpu.iota {dimensions = array<i32: 1>} : vector<1x128xi32>
    %123 = vector.broadcast %arg0 : i32 to vector<1x128xi32>
    %124 = arith.cmpi eq, %122, %123 : vector<1x128xi32>
    %c0_51 = arith.constant 0 : index
    %c0_52 = arith.constant 0 : index
    %125 = vector.load %arg12[%c0_51, %c0_52] : memref<1x128xf32, #tpu.memory_space<vmem>>, vector<1x128xf32>
    %126 = vector.shape_cast %121 : vector<1x1xf32> to vector<1x1xf32>
    %127 = vector.broadcast %126 : vector<1x1xf32> to vector<1x128xf32>
    %128 = arith.select %124, %127, %125 : vector<1x128xi1>, vector<1x128xf32>
    %c0_53 = arith.constant 0 : index
    %c0_54 = arith.constant 0 : index
    %129 = vector.load %arg12[%c0_53, %c0_54] : memref<1x128xf32, #tpu.memory_space<vmem>>, vector<1x128xf32>
    tpu.vector_store %arg12[%c0_53, %c0_54], %128 {strides = array<i32>} : memref<1x128xf32, #tpu.memory_space<vmem>>, vector<1x128xf32>,
    %130 = vector.extract_strided_slice %77 {offsets = [0, 0], sizes = [1, 32], strides = [1, 1]} : vector<1x64xf32> to vector<1x32xf32>
    %131 = vector.extract_strided_slice %77 {offsets = [0, 32], sizes = [1, 32], strides = [1, 1]} : vector<1x64xf32> to vector<1x32xf32>
    %132 = tpu.concatenate %130, %38, %131, %56, %34 in 1 : vector<1x32xf32>, vector<1x32xf32>, vector<1x32xf32>, vector<1x32xf32>, vector<1x64xf32> -> vector<1x192xf32>
    %c0_55 = arith.constant 0 : index
    %c0_56 = arith.constant 0 : index
    %133 = vector.load %arg11[%c0_55, %c0_56] : memref<1x192xf32, #tpu.memory_space<vmem>>, vector<1x192xf32>
    tpu.vector_store %arg11[%c0_55, %c0_56], %132 {strides = array<i32>} : memref<1x192xf32, #tpu.memory_space<vmem>>, vector<1x192xf32>,
    %c7_i32 = arith.constant 7 : i32
    %134 = arith.cmpi eq, %arg0, %c7_i32 : i32
    %135 = arith.extui %134 : i1 to i32
    %c0_i32_57 = arith.constant 0 : i32
    %136 = arith.cmpi ne, %135, %c0_i32_57 : i32
    scf.if %136 {
      %c0_58 = arith.constant 0 : index
      %c0_59 = arith.constant 0 : index
      %137 = vector.load %arg12[%c0_58, %c0_59] : memref<1x128xf32, #tpu.memory_space<vmem>>, vector<1x128xf32>
      %c0_60 = arith.constant 0 : index
      %c0_61 = arith.constant 0 : index
      %138 = vector.load %arg9[%c0_60, %c0_61] : memref<1x128xf32, #tpu.memory_space<vmem>>, vector<1x128xf32>
      tpu.vector_store %arg9[%c0_60, %c0_61], %137 {strides = array<i32>} : memref<1x128xf32, #tpu.memory_space<vmem>>, vector<1x128xf32>,
      %c0_62 = arith.constant 0 : index
      %c0_63 = arith.constant 0 : index
      %139 = vector.load %arg11[%c0_62, %c0_63] : memref<1x192xf32, #tpu.memory_space<vmem>>, vector<1x192xf32>
      %c0_64 = arith.constant 0 : index
      %c0_65 = arith.constant 0 : index
      %140 = vector.load %arg10[%c0_64, %c0_65] : memref<1x192xf32, #tpu.memory_space<vmem>>, vector<1x192xf32>
      tpu.vector_store %arg10[%c0_64, %c0_65], %139 {strides = array<i32>} : memref<1x192xf32, #tpu.memory_space<vmem>>, vector<1x192xf32>,
    } else {
    }
    return
  }
  func.func @transform_0(%arg0: i32, %arg1: memref<8x2xi32, #tpu.memory_space<smem>>) -> (i32, i32, i32) {
    %0 = arith.index_cast %arg0 : i32 to index
    %c0 = arith.constant 0 : index
    %1 = memref.load %arg1[%0, %c0] : memref<8x2xi32, #tpu.memory_space<smem>>
    %c0_i32 = arith.constant 0 : i32
    %c0_i32_0 = arith.constant 0 : i32
    %c0_i32_1 = arith.constant 0 : i32
    return %1, %c0_i32, %c0_i32_0 : i32, i32, i32
  }
  func.func @transform_1(%arg0: i32, %arg1: memref<8x2xi32, #tpu.memory_space<smem>>) -> (i32, i32, i32) {
    %c0_i32 = arith.constant 0 : i32
    %c0_i32_0 = arith.constant 0 : i32
    %c0_i32_1 = arith.constant 0 : i32
    %c0_i32_2 = arith.constant 0 : i32
    return %c0_i32, %c0_i32_0, %c0_i32_1 : i32, i32, i32
  }
  func.func @transform_2(%arg0: i32, %arg1: memref<8x2xi32, #tpu.memory_space<smem>>) -> (i32, i32, i32) {
    %c0_i32 = arith.constant 0 : i32
    %c0_i32_0 = arith.constant 0 : i32
    %c0_i32_1 = arith.constant 0 : i32
    %c0_i32_2 = arith.constant 0 : i32
    return %c0_i32, %c0_i32_0, %c0_i32_1 : i32, i32, i32
  }
  func.func @transform_3(%arg0: i32, %arg1: memref<8x2xi32, #tpu.memory_space<smem>>) -> (i32, i32) {
    %c0_i32 = arith.constant 0 : i32
    %c0_i32_0 = arith.constant 0 : i32
    %c0_i32_1 = arith.constant 0 : i32
    return %c0_i32, %c0_i32_0 : i32, i32
  }
  func.func @transform_4(%arg0: i32, %arg1: memref<8x2xi32, #tpu.memory_space<smem>>) -> (i32, i32) {
    %c0_i32 = arith.constant 0 : i32
    %c0_i32_0 = arith.constant 0 : i32
    %c0_i32_1 = arith.constant 0 : i32
    return %c0_i32, %c0_i32_0 : i32, i32
  }
  func.func @transform_5(%arg0: i32, %arg1: memref<8x2xi32, #tpu.memory_space<smem>>) -> (i32, i32) {
    %c0_i32 = arith.constant 0 : i32
    %c0_i32_0 = arith.constant 0 : i32
    %c0_i32_1 = arith.constant 0 : i32
    return %c0_i32, %c0_i32_0 : i32, i32
  }
  func.func @transform_6(%arg0: i32, %arg1: memref<8x2xi32, #tpu.memory_space<smem>>) -> (i32, i32) {
    %c0_i32 = arith.constant 0 : i32
    %c0_i32_0 = arith.constant 0 : i32
    %c0_i32_1 = arith.constant 0 : i32
    return %c0_i32, %c0_i32_0 : i32, i32
  }
  func.func @transform_7(%arg0: i32, %arg1: memref<8x2xi32, #tpu.memory_space<smem>>) -> (i32, i32) {
    %c0_i32 = arith.constant 0 : i32
    %c0_i32_0 = arith.constant 0 : i32
    %c0_i32_1 = arith.constant 0 : i32
    return %c0_i32, %c0_i32_0 : i32, i32
  }
  func.func @transform_8(%arg0: i32, %arg1: memref<8x2xi32, #tpu.memory_space<smem>>) -> (i32, i32) {
    %c0_i32 = arith.constant 0 : i32
    %c0_i32_0 = arith.constant 0 : i32
    %c0_i32_1 = arith.constant 0 : i32
    return %c0_i32, %c0_i32_0 : i32, i32
  }
}

</mosaic_0001>

<llo_original>
// kernel: known_output_decoder_sequence.1
$region0: #{known_output_decoder_sequence.1}
  #allocation0 [shape = 'u32[]', space=smem, size = 0x4, offset = 0x4, fixed_abs, tag = 'smem constant byte address 0x4 - core index']
  #allocation1 [shape = 'u32[72,128]{1,0:T(1,128)}', space=vmem, size = 0x9000, scoped, tag = 'internal scratch']
  #allocation2 [shape = 'f32[1,192]{1,0:T(1,128)}', space=vmem, size = 0x400, scoped, tag = 'scratch operand']
  #allocation3 [shape = 'f32[1,128]{1,0:T(1,128)}', space=vmem, size = 0x200, scoped, tag = 'scratch operand']
  #allocation4 [shape = 's32[1]{0}', space=sflag, size = 0x4, scoped, tag = 'scoped memory for known_output_decoder_sequence.1']
  #allocation5 [shape = 'u8[4096]{0}', space=smem, size = 0x1000, scoped, tag = 'prefetched SMEM operand 0']
  %s0 = inlined_call_operand.vmem [shape: s32[8,2], index: 0, kind: input, shape index: {}]
  %s1 = inlined_call_operand.vmem [shape: f32[128,2,32], index: 1, kind: input, shape index: {}]
  %s2 = inlined_call_operand.vmem [shape: f32[2,8,32], index: 2, kind: input, shape index: {}]
  %s3 = inlined_call_operand.vmem [shape: f32[2,32,8], index: 3, kind: input, shape index: {}]
  %s4 = inlined_call_operand.vmem [shape: f32[1,192], index: 4, kind: input, shape index: {}]
  %s5 = inlined_call_operand.vmem [shape: f32[193,256], index: 5, kind: input, shape index: {}]
  %s6 = inlined_call_operand.vmem [shape: f32[129,64], index: 6, kind: input, shape index: {}]
  %s7 = inlined_call_operand.hbm [shape: f32[66,256], index: 7, kind: input, shape index: {}]
  %s8 = inlined_call_operand.vmem [shape: f32[1,128], index: 8, kind: output, shape index: {0}]
  %s9 = inlined_call_operand.vmem [shape: f32[1,192], index: 9, kind: output, shape index: {1}]
  %10 = xla_tuple %s8, %s9
  %s11 = sld [smem:[#allocation0]]
  $region81: #{known_output_decoder_sequence.1} parent=0
    _
  %s13 = ssub.s32 1, %s11
  %s14 = scalar_select 0, %s13, %s11
  %s16 = sshll.u32 %s0, 4
  %s17 = int_to_ptr.vmem [resolvable:$true] %s16
  %19 = dma.vmem_to_smem %s17, 128, [#allocation5], [#allocation4]
  %21 = dma.done [#allocation4], 128
  %22 = sfence
  $region1: #{known_output_decoder_sequence.1} parent=0
    #allocation6 [shape = 'u8[73728]{0}', space=vmem, size = 0x12000, scoped, tag = 'input window, operand 7, single buffered']
    #allocation7 [shape = 's32[2]{0}', space=sflag, size = 0x8, scoped, tag = 'scoped memory for known_output_decoder_sequence.1']
    %23 = vsyncpa [#allocation7], 0
    loop: start=0, step=1, limit=10
    $region2: #{known_output_decoder_sequence.1} parent=1 // loop_pre_header
      _
    $region3: #{known_output_decoder_sequence.1} parent=1 // loop_header
      %s25 = sphi 0, %s29
      %p26 = scmp.ge.s32.totalorder %s25, 10
      %s39 = sphi 0, %s41
      %s42 = sphi 0, %s39
      %s43 = sphi 0, %s42
      %s59 = sphi 0, %s43
      %s63 = sphi 0, %s63
      %s65 = sphi 0, %s63
      %s66 = sphi 0, %s65
      %s80 = sphi 0, %s66
      %s84 = sphi 0, %s84
      %s86 = sphi 0, %s84
      %s87 = sphi 0, %s86
      %s101 = sphi 0, %s87
      %s105 = sphi 0, %s105
      %s107 = sphi 0, %s105
      %s108 = sphi 0, %s107
      %s122 = sphi 0, %s108
      %s126 = sphi 0, %s126
      %s128 = sphi 0, %s126
      %s129 = sphi 0, %s128
      %s143 = sphi 0, %s129
      %s147 = sphi 0, %s147
      %s149 = sphi 0, %s147
      %s150 = sphi 0, %s149
      %s164 = sphi 0, %s150
      %s168 = sphi 0, %s168
      %s170 = sphi 0, %s168
      %s171 = sphi 0, %s170
      %s185 = sphi 0, %s171
      %s189 = sphi 0, %s189
      %s191 = sphi 0, %s189
      %s192 = sphi 0, %s191
      %s206 = sphi 0, %s192
      %s210 = sphi 0, %s210
      %s212 = sphi 0, %s210
      %s213 = sphi 0, %s212
      %s227 = sphi 0, %s213
    $region4: #{known_output_decoder_sequence.1} parent=1 // loop_header_branch
      %28 = sbr.rel (%p26) target = $region8
    $region5: #{known_output_decoder_sequence.1} parent=1 // loop_body
      %s30 = ssub.s32 %s25, 1
      %s31 = ssub.s32 %s25, 2
      %s32 = sadd.s32 %s25, 1
      %s33 = smul.u32 %s25, 128
      %s34 = sld [smem:[#allocation5 + %s33]]
      %s35 = smul.u32 %s32, 128
      %s36 = sld [smem:[#allocation5 + %s35]]
      %s37 = ssub.s32 %s34, %s36
      %p38 = scmp.eq.s32.totalorder %s37, 0
      %s40 = sadd.s32 %s39, 1
      %s41 = scalar_select %p38, %s39, %s40
      %p44 = pneg %p38
      %p45 = scmp.eq.s32.totalorder %s25, 7
      %p46 = por %p44, %p45
      %p47 = scmp.ne.s32.totalorder %s39, %s42
      %p48 = scmp.eq.s32.totalorder %s25, 0
      %p49 = por %p47, %p48
      %p50 = scmp.ne.s32.totalorder %s39, %s42
      %p51 = scmp.eq.s32.totalorder %s30, 7
      %p52 = por %p50, %p51
      %p53 = scmp.ne.s32.totalorder %s42, %s43
      %p54 = scmp.eq.s32.totalorder %s30, 0
      %p55 = por %p53, %p54
      %p56 = scmp.ne.s32.totalorder %s42, %s43
      %p57 = scmp.eq.s32.totalorder %s31, 7
      %p58 = por %p56, %p57
      %p60 = scmp.ne.s32.totalorder %s43, %s59
      %p61 = scmp.eq.s32.totalorder %s31, 0
      %p62 = por %p60, %p61
      %s64 = sadd.s32 %s63, 1
      %p67 = scmp.eq.s32.totalorder %s25, 7
      %p68 = scmp.ne.s32.totalorder %s63, %s65
      %p69 = scmp.eq.s32.totalorder %s25, 0
      %p70 = por %p68, %p69
      %p71 = scmp.ne.s32.totalorder %s63, %s65
      %p72 = scmp.eq.s32.totalorder %s30, 7
      %p73 = por %p71, %p72
      %p74 = scmp.ne.s32.totalorder %s65, %s66
      %p75 = scmp.eq.s32.totalorder %s30, 0
      %p76 = por %p74, %p75
      %p77 = scmp.ne.s32.totalorder %s65, %s66
      %p78 = scmp.eq.s32.totalorder %s31, 7
      %p79 = por %p77, %p78
      %p81 = scmp.ne.s32.totalorder %s66, %s80
      %p82 = scmp.eq.s32.totalorder %s31, 0
      %p83 = por %p81, %p82
      %s85 = sadd.s32 %s84, 1
      %p88 = scmp.eq.s32.totalorder %s25, 7
      %p89 = scmp.ne.s32.totalorder %s84, %s86
      %p90 = scmp.eq.s32.totalorder %s25, 0
      %p91 = por %p89, %p90
      %p92 = scmp.ne.s32.totalorder %s84, %s86
      %p93 = scmp.eq.s32.totalorder %s30, 7
      %p94 = por %p92, %p93
      %p95 = scmp.ne.s32.totalorder %s86, %s87
      %p96 = scmp.eq.s32.totalorder %s30, 0
      %p97 = por %p95, %p96
      %p98 = scmp.ne.s32.totalorder %s86, %s87
      %p99 = scmp.eq.s32.totalorder %s31, 7
      %p100 = por %p98, %p99
      %p102 = scmp.ne.s32.totalorder %s87, %s101
      %p103 = scmp.eq.s32.totalorder %s31, 0
      %p104 = por %p102, %p103
      %s106 = sadd.s32 %s105, 1
      %p109 = scmp.eq.s32.totalorder %s25, 7
      %p110 = scmp.ne.s32.totalorder %s105, %s107
      %p111 = scmp.eq.s32.totalorder %s25, 0
      %p112 = por %p110, %p111
      %p113 = scmp.ne.s32.totalorder %s105, %s107
      %p114 = scmp.eq.s32.totalorder %s30, 7
      %p115 = por %p113, %p114
      %p116 = scmp.ne.s32.totalorder %s107, %s108
      %p117 = scmp.eq.s32.totalorder %s30, 0
      %p118 = por %p116, %p117
      %p119 = scmp.ne.s32.totalorder %s107, %s108
      %p120 = scmp.eq.s32.totalorder %s31, 7
      %p121 = por %p119, %p120
      %p123 = scmp.ne.s32.totalorder %s108, %s122
      %p124 = scmp.eq.s32.totalorder %s31, 0
      %p125 = por %p123, %p124
      %s127 = sadd.s32 %s126, 1
      %p130 = scmp.eq.s32.totalorder %s25, 7
      %p131 = scmp.ne.s32.totalorder %s126, %s128
      %p132 = scmp.eq.s32.totalorder %s25, 0
      %p133 = por %p131, %p132
      %p134 = scmp.ne.s32.totalorder %s126, %s128
      %p135 = scmp.eq.s32.totalorder %s30, 7
      %p136 = por %p134, %p135
      %p137 = scmp.ne.s32.totalorder %s128, %s129
      %p138 = scmp.eq.s32.totalorder %s30, 0
      %p139 = por %p137, %p138
      %p140 = scmp.ne.s32.totalorder %s128, %s129
      %p141 = scmp.eq.s32.totalorder %s31, 7
      %p142 = por %p140, %p141
      %p144 = scmp.ne.s32.totalorder %s129, %s143
      %p145 = scmp.eq.s32.totalorder %s31, 0
      %p146 = por %p144, %p145
      %s148 = sadd.s32 %s147, 1
      %p151 = scmp.eq.s32.totalorder %s25, 7
      %p152 = scmp.ne.s32.totalorder %s147, %s149
      %p153 = scmp.eq.s32.totalorder %s25, 0
      %p154 = por %p152, %p153
      %p155 = scmp.ne.s32.totalorder %s147, %s149
      %p156 = scmp.eq.s32.totalorder %s30, 7
      %p157 = por %p155, %p156
      %p158 = scmp.ne.s32.totalorder %s149, %s150
      %p159 = scmp.eq.s32.totalorder %s30, 0
      %p160 = por %p158, %p159
      %p161 = scmp.ne.s32.totalorder %s149, %s150
      %p162 = scmp.eq.s32.totalorder %s31, 7
      %p163 = por %p161, %p162
      %p165 = scmp.ne.s32.totalorder %s150, %s164
      %p166 = scmp.eq.s32.totalorder %s31, 0
      %p167 = por %p165, %p166
      %s169 = sadd.s32 %s168, 1
      %p172 = scmp.eq.s32.totalorder %s25, 7
      %p173 = scmp.ne.s32.totalorder %s168, %s170
      %p174 = scmp.eq.s32.totalorder %s25, 0
      %p175 = por %p173, %p174
      %p176 = scmp.ne.s32.totalorder %s168, %s170
      %p177 = scmp.eq.s32.totalorder %s30, 7
      %p178 = por %p176, %p177
      %p179 = scmp.ne.s32.totalorder %s170, %s171
      %p180 = scmp.eq.s32.totalorder %s30, 0
      %p181 = por %p179, %p180
      %p182 = scmp.ne.s32.totalorder %s170, %s171
      %p183 = scmp.eq.s32.totalorder %s31, 7
      %p184 = por %p182, %p183
      %p186 = scmp.ne.s32.totalorder %s171, %s185
      %p187 = scmp.eq.s32.totalorder %s31, 0
      %p188 = por %p186, %p187
      %s190 = sadd.s32 %s189, 1
      %p193 = scmp.eq.s32.totalorder %s25, 7
      %p194 = scmp.ne.s32.totalorder %s189, %s191
      %p195 = scmp.eq.s32.totalorder %s25, 0
      %p196 = por %p194, %p195
      %p197 = scmp.ne.s32.totalorder %s189, %s191
      %p198 = scmp.eq.s32.totalorder %s30, 7
      %p199 = por %p197, %p198
      %p200 = scmp.ne.s32.totalorder %s191, %s192
      %p201 = scmp.eq.s32.totalorder %s30, 0
      %p202 = por %p200, %p201
      %p203 = scmp.ne.s32.totalorder %s191, %s192
      %p204 = scmp.eq.s32.totalorder %s31, 7
      %p205 = por %p203, %p204
      %p207 = scmp.ne.s32.totalorder %s192, %s206
      %p208 = scmp.eq.s32.totalorder %s31, 0
      %p209 = por %p207, %p208
      %s211 = sadd.s32 %s210, 1
      %p214 = scmp.eq.s32.totalorder %s25, 7
      %p215 = scmp.ne.s32.totalorder %s210, %s212
      %p216 = scmp.eq.s32.totalorder %s25, 0
      %p217 = por %p215, %p216
      %p218 = scmp.ne.s32.totalorder %s210, %s212
      %p219 = scmp.eq.s32.totalorder %s30, 7
      %p220 = por %p218, %p219
      %p221 = scmp.ne.s32.totalorder %s212, %s213
      %p222 = scmp.eq.s32.totalorder %s30, 0
      %p223 = por %p221, %p222
      %p224 = scmp.ne.s32.totalorder %s212, %s213
      %p225 = scmp.eq.s32.totalorder %s31, 7
      %p226 = por %p224, %p225
      %p228 = scmp.ne.s32.totalorder %s213, %s227
      %p229 = scmp.eq.s32.totalorder %s31, 0
      %p230 = por %p228, %p229
      %p231 = scmp.le.s32.totalorder 1, %s25
      %p232 = scmp.lt.s32.totalorder %s25, 9
      %p233 = pnand %p231, %p232
      %p234 = pneg %p233
      // Predicated region
      $region9: #{known_output_decoder_sequence.1} parent=5 // pred_check
        _
      $region10: #{known_output_decoder_sequence.1} parent=5 // pred_check_branch
        %236 = sbr.rel (%p233) target = $region12
      $region11: #{known_output_decoder_sequence.1} parent=5 // pred_region
        %s237 = ssub.s32 %s25, 1
        // Predicated region
        $region13: #{known_output_decoder_sequence.1} parent=11 // pred_check
          %p238 = pneg %p76
        $region14: #{known_output_decoder_sequence.1} parent=11 // pred_check_branch
          %240 = sbr.rel (%p238) target = $region16
        $region15: #{known_output_decoder_sequence.1} parent=11 // pred_region
          _
        $region16: #{known_output_decoder_sequence.1} parent=11 // pred_fallthru
          _
        // Predicated region
        $region17: #{known_output_decoder_sequence.1} parent=11 // pred_check
          %p241 = pneg %p97
        $region18: #{known_output_decoder_sequence.1} parent=11 // pred_check_branch
          %243 = sbr.rel (%p241) target = $region20
        $region19: #{known_output_decoder_sequence.1} parent=11 // pred_region
          _
        $region20: #{known_output_decoder_sequence.1} parent=11 // pred_fallthru
          _
        // Predicated region
        $region21: #{known_output_decoder_sequence.1} parent=11 // pred_check
          %p244 = pneg %p118
        $region22: #{known_output_decoder_sequence.1} parent=11 // pred_check_branch
          %246 = sbr.rel (%p244) target = $region24
        $region23: #{known_output_decoder_sequence.1} parent=11 // pred_region
          _
        $region24: #{known_output_decoder_sequence.1} parent=11 // pred_fallthru
          _
        // Predicated region
        $region25: #{known_output_decoder_sequence.1} parent=11 // pred_check
          %p247 = pneg %p139
        $region26: #{known_output_decoder_sequence.1} parent=11 // pred_check_branch
          %249 = sbr.rel (%p247) target = $region28
        $region27: #{known_output_decoder_sequence.1} parent=11 // pred_region
          _
        $region28: #{known_output_decoder_sequence.1} parent=11 // pred_fallthru
          _
        // Predicated region
        $region29: #{known_output_decoder_sequence.1} parent=11 // pred_check
          %p250 = pneg %p160
        $region30: #{known_output_decoder_sequence.1} parent=11 // pred_check_branch
          %252 = sbr.rel (%p250) target = $region32
        $region31: #{known_output_decoder_sequence.1} parent=11 // pred_region
          _
        $region32: #{known_output_decoder_sequence.1} parent=11 // pred_fallthru
          _
        // Predicated region
        $region33: #{known_output_decoder_sequence.1} parent=11 // pred_check
          %p253 = pneg %p181
        $region34: #{known_output_decoder_sequence.1} parent=11 // pred_check_branch
          %255 = sbr.rel (%p253) target = $region36
        $region35: #{known_output_decoder_sequence.1} parent=11 // pred_region
          %257 = vsyncadd [#allocation7], 0
          %s258 = sshll.u32 %s7, 4
          %s259 = int_to_ptr.hbm [resolvable:$true] %s258
          %s260 = sshll.u32 [#allocation6], 4
          %s261 = int_to_ptr.vmem [resolvable:$true] %s260
          %266 = dma.hbm_to_vmem [thread:$0]  %s259, 2304, %s261, [#allocation7], 256, 256, 16
        $region36: #{known_output_decoder_sequence.1} parent=11 // pred_fallthru
          _
      $region12: #{known_output_decoder_sequence.1} parent=5 // pred_fallthru
        _
      %p267 = scmp.lt.s32.totalorder %s25, 8
      // Predicated region
      $region37: #{known_output_decoder_sequence.1} parent=5 // pred_check
        %p268 = pneg %p267
      $region38: #{known_output_decoder_sequence.1} parent=5 // pred_check_branch
        %270 = sbr.rel (%p268) target = $region40
      $region39: #{known_output_decoder_sequence.1} parent=5 // pred_region
        // Predicated region
        $region41: #{known_output_decoder_sequence.1} parent=39 // pred_check
          %p271 = pneg %p49
        $region42: #{known_output_decoder_sequence.1} parent=39 // pred_check_branch
          %273 = sbr.rel (%p271) target = $region44
        $region43: #{known_output_decoder_sequence.1} parent=39 // pred_region
          %s274 = smul.u32 %s25, 128
          %s275 = sld [smem:[#allocation5 + %s274]]
          %p276 = scmp.lt.s32.totalorder %s275, 127
          %s277 = scalar_select %p276, %s275, 127
          %s278 = smul.addr %s277, 2
          %s279 = scalar_lea.vmem %s1, %s278
          %s280 = smul.u32 %s25, 128
          %s281 = sld [smem:[#allocation5 + %s280]]
        $region44: #{known_output_decoder_sequence.1} parent=39 // pred_fallthru
          _
      $region40: #{known_output_decoder_sequence.1} parent=5 // pred_fallthru
        _
      %p282 = scmp.le.s32.totalorder 1, %s25
      %p283 = scmp.lt.s32.totalorder %s25, 9
      %p284 = pnand %p282, %p283
      %p285 = pneg %p284
      // Predicated region
      $region45: #{known_output_decoder_sequence.1} parent=5 // pred_check
        _
      $region46: #{known_output_decoder_sequence.1} parent=5 // pred_check_branch
        %287 = sbr.rel (%p284) target = $region48
      $region47: #{known_output_decoder_sequence.1} parent=5 // pred_region
        %s288 = ssub.s32 %s25, 1
        // Predicated region
        $region49: #{known_output_decoder_sequence.1} parent=47 // pred_check
          %p289 = pneg %p181
        $region50: #{known_output_decoder_sequence.1} parent=47 // pred_check_branch
          %291 = sbr.rel (%p289) target = $region52
        $region51: #{known_output_decoder_sequence.1} parent=47 // pred_region
          %293 = dma.done [#allocation7], 2304
        $region52: #{known_output_decoder_sequence.1} parent=47 // pred_fallthru
          _
        %s294 = smul.u32 %s30, 128
        %s295 = sld [smem:[#allocation5 + %s294]]
        %p296 = scmp.lt.s32.totalorder %s295, 127
        %s297 = scalar_select %p296, %s295, 127
        %s298 = smul.addr %s297, 2
        %s299 = scalar_lea.vmem %s1, %s298
        %p300 = pneg %p55
        %p301 = pneg %p52
        %p302 = pneg %p76
        %p303 = pneg %p73
        %p304 = pneg %p97
        %p305 = pneg %p94
        %p306 = pneg %p118
        %p307 = pneg %p115
        %p308 = pneg %p139
        %p309 = pneg %p136
        %p310 = pneg %p160
        %p311 = pneg %p157
        %p312 = pneg %p181
        %p313 = pneg %p178
        %p314 = pneg %p202
        %p315 = pneg %p199
        %p316 = pneg %p223
        %p317 = pneg %p220
        %s318 = smul.u32 %s30, 128
        %s319 = sld [smem:[#allocation5 + %s318]]
        %p320 = scmp.lt.s32.totalorder %s319, 127
        %s321 = scalar_select %p320, %s319, 127
        %s322 = smul.addr %s321, 2
        %s323 = scalar_lea.vmem %s1, %s322
        %s324 = smul.u32 %s30, 128
        %s325 = sld [smem:[#allocation5 + %s324]]
        %p326 = scmp.eq.s32.totalorder %s30, 0
        // Predicated region
        $region53: #{known_output_decoder_sequence.1} parent=47 // pred_check
          %p327 = pneg %p326
        $region54: #{known_output_decoder_sequence.1} parent=47 // pred_check_branch
          %329 = sbr.rel (%p327) target = $region56
        $region55: #{known_output_decoder_sequence.1} parent=47 // pred_region
          %v330 = vld [vmem:[%s4] sm:$0x3]
          %v331 = vlaneseq
          %vm332 = vcmp.ge.s32.totalorder %v331, 0
          %vm333 = vcmp.lt.s32.totalorder %v331, 192
          %vm334 = vmand %vm332, %vm333
          %335 = vst.msk [vmem:[#allocation2] sm:$0x3] %vm334, %v330
          %336 = vst [vmem:[#allocation3] sm:$0x1] 0.0
        $region56: #{known_output_decoder_sequence.1} parent=47 // pred_fallthru
          _
        %v337 = vld [vmem:[%s323] sm:$0x3]
        %v338 = vld [vmem:[#allocation2] sm:$0x1]
        %340 = vrot.lane.b32.xlu0 %v337, 64
        %v341 = vpop.permute.xlu0 %340
        %v344 = vperm.slane %v338, 0
        %345 = vrot.lane.b32.xlu0 %v344, 32
        %v346 = vpop.permute.xlu0 %345
        %v348 = vrot.slane %v337, 1
        %349 = vrot.lane.b32.xlu0 %v348, 32
        %v350 = vpop.permute.xlu0 %349
        %vm352 = vcmask 523264
        %v353 = vsel %vm352, %v338, %v341
        %vm354 = vcmask 785408
        %v355 = vsel %vm354, %v353, %v346
        %vm356 = vcmask 261120
        %v357 = vsel %vm356, %v346, %v350
        %v358 = vld [vmem:[%s5] sm:$0xff]
        %v359 = vld [vmem:[%s5 + $0x8] sm:$0xff]
        %v360 = vld [vmem:[%s5 + $0x10] sm:$0xff]
        %v361 = vld [vmem:[%s5 + $0x18] sm:$0xff]
        %v362 = vld [vmem:[%s5 + $0x20] sm:$0xff]
        %v363 = vld [vmem:[%s5 + $0x28] sm:$0xff]
        %v364 = vld [vmem:[%s5 + $0x30] sm:$0xff]
        %v365 = vld [vmem:[%s5 + $0x38] sm:$0xff]
        %v366 = vld [vmem:[%s5 + $0x40] sm:$0xff]
        %v367 = vld [vmem:[%s5 + $0x48] sm:$0xff]
        %v368 = vld [vmem:[%s5 + $0x50] sm:$0xff]
        %v369 = vld [vmem:[%s5 + $0x58] sm:$0xff]
        %v370 = vld [vmem:[%s5 + $0x60] sm:$0xff]
        %v371 = vld [vmem:[%s5 + $0x68] sm:$0xff]
        %v372 = vld [vmem:[%s5 + $0x70] sm:$0xff]
        %v373 = vld [vmem:[%s5 + $0x78] sm:$0xff]
        %v374 = vld [vmem:[%s5 + $0x80] sm:$0xff]
        %v375 = vld [vmem:[%s5 + $0x88] sm:$0xff]
        %v376 = vld [vmem:[%s5 + $0x90] sm:$0xff]
        %v377 = vld [vmem:[%s5 + $0x98] sm:$0xff]
        %v378 = vld [vmem:[%s5 + $0xa0] sm:$0xff]
        %v379 = vld [vmem:[%s5 + $0xa8] sm:$0xff]
        %v380 = vld [vmem:[%s5 + $0xb0] sm:$0xff]
        %v381 = vld [vmem:[%s5 + $0xb8] sm:$0xff]
        %v382 = vld [vmem:[%s5 + $0xc0] sm:$0xff]
        %v383 = vld [vmem:[%s5 + $0xc8] sm:$0xff]
        %v384 = vld [vmem:[%s5 + $0xd0] sm:$0xff]
        %v385 = vld [vmem:[%s5 + $0xd8] sm:$0xff]
        %v386 = vld [vmem:[%s5 + $0xe0] sm:$0xff]
        %v387 = vld [vmem:[%s5 + $0xe8] sm:$0xff]
        %v388 = vld [vmem:[%s5 + $0xf0] sm:$0xff]
        %v389 = vld [vmem:[%s5 + $0xf8] sm:$0xff]
        %v390 = vld [vmem:[%s5 + $0x100] sm:$0xff]
        %v391 = vld [vmem:[%s5 + $0x108] sm:$0xff]
        %v392 = vld [vmem:[%s5 + $0x110] sm:$0xff]
        %v393 = vld [vmem:[%s5 + $0x118] sm:$0xff]
        %v394 = vld [vmem:[%s5 + $0x120] sm:$0xff]
        %v395 = vld [vmem:[%s5 + $0x128] sm:$0xff]
        %v396 = vld [vmem:[%s5 + $0x130] sm:$0xff]
        %v397 = vld [vmem:[%s5 + $0x138] sm:$0xff]
        %v398 = vld [vmem:[%s5 + $0x140] sm:$0xff]
        %v399 = vld [vmem:[%s5 + $0x148] sm:$0xff]
        %v400 = vld [vmem:[%s5 + $0x150] sm:$0xff]
        %v401 = vld [vmem:[%s5 + $0x158] sm:$0xff]
        %v402 = vld [vmem:[%s5 + $0x160] sm:$0xff]
        %v403 = vld [vmem:[%s5 + $0x168] sm:$0xff]
        %v404 = vld [vmem:[%s5 + $0x170] sm:$0xff]
        %v405 = vld [vmem:[%s5 + $0x178] sm:$0xff]
        %s406 = scalar_lea.vmem %s5, 384
        %v407 = vld [vmem:[%s406] ss:$8 sm:$0x3]
        %v409 = vperm.slane %v407, 0
        %v410 = vperm.slane %v407, 1
        %v414 = vsel %vm352, %v357, 0
        %416 = vmatpush.msra.mxu0 %v388
        %417 = vmatpush.msra.mxu0 %v386
        %418 = vmatpush.msra.mxu0 %v384
        %419 = vmatpush.msra.mxu0 %v382
        %420 = vmatpush.msra.mxu0 %v380
        %421 = vmatpush.msra.mxu0 %v378
        %422 = vmatpush.msra.mxu0 %v376
        %423 = vmatpush.msra.mxu0 %v374
        %424 = vmatpush.msra.mxu0 %v372
        %425 = vmatpush.msra.mxu0 %v370
        %426 = vmatpush.msra.mxu0 %v368
        %427 = vmatpush.msra.mxu0 %v366
        %428 = vmatpush.msra.mxu0 %v364
        %429 = vmatpush.msra.mxu0 %v362
        %430 = vmatpush.msra.mxu0 %v360
        %431 = vmatpush.msra.mxu0 %v358
        %432 = vmatmul.f32.gmra.mxu0 %v355
        %v433 = vpop.f32.mrf.mxu0
        %v434 = vadd.f32 %v409, %v433
        %435 = vdwg.mxu0
        %436 = vmatpush.msra.mxu0 0.0
        %437 = vmatpush.msra.mxu0 0.0
        %438 = vmatpush.msra.mxu0 0.0
        %439 = vmatpush.msra.mxu0 0.0
        %440 = vmatpush.msra.mxu0 0.0
        %441 = vmatpush.msra.mxu0 0.0
        %442 = vmatpush.msra.mxu0 0.0
        %443 = vmatpush.msra.mxu0 0.0
        %444 = vmatpush.msra.mxu0 %v404
        %445 = vmatpush.msra.mxu0 %v402
        %446 = vmatpush.msra.mxu0 %v400
        %447 = vmatpush.msra.mxu0 %v398
        %448 = vmatpush.msra.mxu0 %v396
        %449 = vmatpush.msra.mxu0 %v394
        %450 = vmatpush.msra.mxu0 %v392
        %451 = vmatpush.msra.mxu0 %v390
        %452 = vmatmul.f32.gmra.mxu0 %v414
        %v453 = vpop.f32.mrf.mxu0
        %v454 = vadd.f32 %v434, %v453
        %455 = vdwg.mxu0
        %456 = vmatpush.msra.mxu0 %v389
        %457 = vmatpush.msra.mxu0 %v387
        %458 = vmatpush.msra.mxu0 %v385
        %459 = vmatpush.msra.mxu0 %v383
        %460 = vmatpush.msra.mxu0 %v381
        %461 = vmatpush.msra.mxu0 %v379
        %462 = vmatpush.msra.mxu0 %v377
        %463 = vmatpush.msra.mxu0 %v375
        %464 = vmatpush.msra.mxu0 %v373
        %465 = vmatpush.msra.mxu0 %v371
        %466 = vmatpush.msra.mxu0 %v369
        %467 = vmatpush.msra.mxu0 %v367
        %468 = vmatpush.msra.mxu0 %v365
        %469 = vmatpush.msra.mxu0 %v363
        %470 = vmatpush.msra.mxu0 %v361
        %471 = vmatpush.msra.mxu0 %v359
        %472 = vmatmul.f32.gmra.mxu0 %v355
        %v473 = vpop.f32.mrf.mxu0
        %v474 = vadd.f32 %v410, %v473
        %475 = vdwg.mxu0
        %476 = vmatpush.msra.mxu0 0.0
        %477 = vmatpush.msra.mxu0 0.0
        %478 = vmatpush.msra.mxu0 0.0
        %479 = vmatpush.msra.mxu0 0.0
        %480 = vmatpush.msra.mxu0 0.0
        %481 = vmatpush.msra.mxu0 0.0
        %482 = vmatpush.msra.mxu0 0.0
        %483 = vmatpush.msra.mxu0 0.0
        %484 = vmatpush.msra.mxu0 %v405
        %485 = vmatpush.msra.mxu0 %v403
        %486 = vmatpush.msra.mxu0 %v401
        %487 = vmatpush.msra.mxu0 %v399
        %488 = vmatpush.msra.mxu0 %v397
        %489 = vmatpush.msra.mxu0 %v395
        %490 = vmatpush.msra.mxu0 %v393
        %491 = vmatpush.msra.mxu0 %v391
        %492 = vmatmul.f32.gmra.mxu0 %v414
        %v493 = vpop.f32.mrf.mxu0
        %v494 = vadd.f32 %v474, %v493
        %495 = vdwg.mxu0
        %v496 = vxor.u32 %v454, 2147483648
        %v497 = vxor.u32 %v494, 2147483648
        %v498 = vmul.f32 %v496, 1.442695
        %v499 = vpow.pop %v498
        %v500 = vmul.f32 %v497, 1.442695
        %v501 = vpow.pop %v500
        %v502 = vadd.f32 %v499, 1.0
        %v503 = vadd.f32 %v501, 1.0
        %v504 = vrcp.pop %v502
        %v505 = vmul.f32 %v502, %v504
        %v506 = vsub.f32 1.0, %v505
        %v507 = vmul.f32 %v504, %v506
        %v508 = vadd.f32 %v504, %v507
        %vm509 = vweird.f32 %v502
        %vm510 = vweird.f32 %v504
        %vm511 = vmor %vm509, %vm510
        %v512 = vsel %vm511, %v504, %v508
        %v513 = vand.u32 2147483647, %v502
        %vm514 = vcmp.eq.f32.partialorder %v513, 8.507059e+37
        %v515 = vand.u32 %v502, 2147483648
        %v516 = vor.u32 1.1754944e-38, %v515
        %v517 = vsel %vm514, %v516, %v512
        %v518 = vmul.f32 1.0, %v517
        %v519 = vrcp.pop %v503
        %v520 = vmul.f32 %v503, %v519
        %v521 = vsub.f32 1.0, %v520
        %v522 = vmul.f32 %v519, %v521
        %v523 = vadd.f32 %v519, %v522
        %vm524 = vweird.f32 %v503
        %vm525 = vweird.f32 %v519
        %vm526 = vmor %vm524, %vm525
        %v527 = vsel %vm526, %v519, %v523
        %v528 = vand.u32 2147483647, %v503
        %vm529 = vcmp.eq.f32.partialorder %v528, 8.507059e+37
        %v530 = vand.u32 %v503, 2147483648
        %v531 = vor.u32 1.1754944e-38, %v530
        %v532 = vsel %vm529, %v531, %v527
        %v533 = vmul.f32 1.0, %v532
        %v534 = vtanh.pop %v454
        %v535 = vtanh.pop %v494
        %v536 = vld [vmem:[#allocation2 + $0x1] sm:$0x1]
        %v538 = vperm.slane %v536, 0
        %539 = vrot.lane.b32.xlu0 %v538, 32
        %v540 = vpop.permute.xlu0 %539
        %v542 = vmul.f32 %v518, %v540
        %544 = vrot.lane.b32.xlu0 %v534, 64
        %v545 = vpop.permute.xlu0 %544
        %v547 = vmul.f32 %v518, %v545
        %549 = vrot.lane.b32.xlu0 %v547, 32
        %v550 = vpop.permute.xlu0 %549
        %v552 = vadd.f32 %v542, %v550
        %v553 = vmul.f32 %v533, %v536
        %555 = vrot.lane.b32.xlu0 %v535, 64
        %v556 = vpop.permute.xlu0 %555
        %v558 = vmul.f32 %v533, %v556
        %560 = vrot.lane.b32.xlu0 %v558, 32
        %v561 = vpop.permute.xlu0 %560
        %v563 = vadd.f32 %v553, %v561
        %565 = vrot.lane.b32.xlu0 %v552, 96
        %v566 = vpop.permute.xlu0 %565
        %v568 = vsel %vm356, %v566, %v563
        %v569 = vtanh.pop %v568
        %571 = vrot.lane.b32.xlu0 %v569, 96
        %v572 = vpop.permute.xlu0 %571
        %v574 = vmul.f32 %v518, %v572
        %v575 = vld [vmem:[%s3] sm:$0xff]
        %v576 = vld [vmem:[%s3 + $0x8] sm:$0xff]
        %v577 = vld [vmem:[%s3 + $0x10] sm:$0xff]
        %v578 = vld [vmem:[%s3 + $0x18] sm:$0xff]
        %580 = vrot.lane.b32.xlu0 %v574, 32
        %v581 = vpop.permute.xlu0 %580
        %v582 = vsel %vm356, %v581, 0
        %584 = vmatpush.msra.mxu0 0.0
        %585 = vmatpush.msra.mxu0 0.0
        %586 = vmatpush.msra.mxu0 0.0
        %587 = vmatpush.msra.mxu0 0.0
        %588 = vmatpush.msra.mxu0 0.0
        %589 = vmatpush.msra.mxu0 0.0
        %590 = vmatpush.msra.mxu0 0.0
        %591 = vmatpush.msra.mxu0 0.0
        %592 = vmatpush.msra.mxu0 0.0
        %593 = vmatpush.msra.mxu0 0.0
        %594 = vmatpush.msra.mxu0 0.0
        %595 = vmatpush.msra.mxu0 0.0
        %596 = vmatpush.msra.mxu0 %v578
        %597 = vmatpush.msra.mxu0 %v577
        %598 = vmatpush.msra.mxu0 %v576
        %599 = vmatpush.msra.mxu0 %v575
        %600 = vmatmul.f32.gmra.mxu0 %v582
        %v601 = vpop.f32.mrf.mxu0
        %v602 = vadd.f32 0.0, %v601
        %603 = vdwg.mxu0
        %vm604 = vcmask 57344
        %v605 = vsel %vm604, %v602, -inf
        %606 = vmax.xlane.f32.xlu0 %v605
        %v607 = vpop.xlane.xlu0 %606
        %v608 = vsub.f32 %v602, %v607
        %v609 = vmul.f32 %v608, 1.442695
        %v610 = vpow.pop %v609
        %v611 = vsel %vm604, %v610, 0.0
        %612 = vadd.xlane.f32.xlu0 %v611
        %v613 = vpop.xlane.xlu0 %612
        %v614 = vrcp.pop %v613
        %v615 = vmul.f32 %v613, %v614
        %v616 = vsub.f32 1.0, %v615
        %v617 = vmul.f32 %v614, %v616
        %v618 = vadd.f32 %v614, %v617
        %vm619 = vweird.f32 %v613
        %vm620 = vweird.f32 %v614
        %vm621 = vmor %vm619, %vm620
        %v622 = vsel %vm621, %v614, %v618
        %v623 = vand.u32 2147483647, %v613
        %vm624 = vcmp.eq.f32.partialorder %v623, 8.507059e+37
        %v625 = vand.u32 %v613, 2147483648
        %v626 = vor.u32 1.1754944e-38, %v625
        %v627 = vsel %vm624, %v626, %v622
        %v628 = vmul.f32 %v610, %v627
        %v629 = vld [vmem:[%s2] sm:$0xff]
        %vm630 = vcmask 64512
        %v632 = vsel %vm630, %v628, 0
        %634 = vmatpush.msra.mxu0 0.0
        %635 = vmatpush.msra.mxu0 0.0
        %636 = vmatpush.msra.mxu0 0.0
        %637 = vmatpush.msra.mxu0 0.0
        %638 = vmatpush.msra.mxu0 0.0
        %639 = vmatpush.msra.mxu0 0.0
        %640 = vmatpush.msra.mxu0 0.0
        %641 = vmatpush.msra.mxu0 0.0
        %642 = vmatpush.msra.mxu0 0.0
        %643 = vmatpush.msra.mxu0 0.0
        %644 = vmatpush.msra.mxu0 0.0
        %645 = vmatpush.msra.mxu0 0.0
        %646 = vmatpush.msra.mxu0 0.0
        %647 = vmatpush.msra.mxu0 0.0
        %648 = vmatpush.msra.mxu0 0.0
        %649 = vmatpush.msra.mxu0 %v629
        %650 = vmatmul.f32.gmra.mxu0 %v632
        %v651 = vpop.f32.mrf.mxu0
        %v652 = vadd.f32 0.0, %v651
        %653 = vdwg.mxu0
        %654 = vrot.lane.b32.xlu0 %v569, 64
        %v655 = vpop.permute.xlu0 %654
        %v657 = vmul.f32 %v533, %v655
        %s658 = scalar_lea.vmem %s3, 32
        %v659 = vld [vmem:[%s658] sm:$0xff]
        %v660 = vld [vmem:[%s658 + $0x8] sm:$0xff]
        %v661 = vld [vmem:[%s658 + $0x10] sm:$0xff]
        %v662 = vld [vmem:[%s658 + $0x18] sm:$0xff]
        %664 = vrot.lane.b32.xlu0 %v657, 32
        %v665 = vpop.permute.xlu0 %664
        %v666 = vsel %vm356, %v665, 0
        %668 = vmatpush.msra.mxu0 0.0
        %669 = vmatpush.msra.mxu0 0.0
        %670 = vmatpush.msra.mxu0 0.0
        %671 = vmatpush.msra.mxu0 0.0
        %672 = vmatpush.msra.mxu0 0.0
        %673 = vmatpush.msra.mxu0 0.0
        %674 = vmatpush.msra.mxu0 0.0
        %675 = vmatpush.msra.mxu0 0.0
        %676 = vmatpush.msra.mxu0 0.0
        %677 = vmatpush.msra.mxu0 0.0
        %678 = vmatpush.msra.mxu0 0.0
        %679 = vmatpush.msra.mxu0 0.0
        %680 = vmatpush.msra.mxu0 %v662
        %681 = vmatpush.msra.mxu0 %v661
        %682 = vmatpush.msra.mxu0 %v660
        %683 = vmatpush.msra.mxu0 %v659
        %684 = vmatmul.f32.gmra.mxu0 %v666
        %v685 = vpop.f32.mrf.mxu0
        %v686 = vadd.f32 0.0, %v685
        %687 = vdwg.mxu0
        %v688 = vsel %vm604, %v686, -inf
        %689 = vmax.xlane.f32.xlu0 %v688
        %v690 = vpop.xlane.xlu0 %689
        %v691 = vsub.f32 %v686, %v690
        %v692 = vmul.f32 %v691, 1.442695
        %v693 = vpow.pop %v692
        %v694 = vsel %vm604, %v693, 0.0
        %695 = vadd.xlane.f32.xlu0 %v694
        %v696 = vpop.xlane.xlu0 %695
        %v697 = vrcp.pop %v696
        %v698 = vmul.f32 %v696, %v697
        %v699 = vsub.f32 1.0, %v698
        %v700 = vmul.f32 %v697, %v699
        %v701 = vadd.f32 %v697, %v700
        %vm702 = vweird.f32 %v696
        %vm703 = vweird.f32 %v697
        %vm704 = vmor %vm702, %vm703
        %v705 = vsel %vm704, %v697, %v701
        %v706 = vand.u32 2147483647, %v696
        %vm707 = vcmp.eq.f32.partialorder %v706, 8.507059e+37
        %v708 = vand.u32 %v696, 2147483648
        %v709 = vor.u32 1.1754944e-38, %v708
        %v710 = vsel %vm707, %v709, %v705
        %v711 = vmul.f32 %v693, %v710
        %s712 = scalar_lea.vmem %s2, 8
        %v713 = vld [vmem:[%s712] sm:$0xff]
        %v715 = vsel %vm630, %v711, 0
        %717 = vmatpush.msra.mxu0 0.0
        %718 = vmatpush.msra.mxu0 0.0
        %719 = vmatpush.msra.mxu0 0.0
        %720 = vmatpush.msra.mxu0 0.0
        %721 = vmatpush.msra.mxu0 0.0
        %722 = vmatpush.msra.mxu0 0.0
        %723 = vmatpush.msra.mxu0 0.0
        %724 = vmatpush.msra.mxu0 0.0
        %725 = vmatpush.msra.mxu0 0.0
        %726 = vmatpush.msra.mxu0 0.0
        %727 = vmatpush.msra.mxu0 0.0
        %728 = vmatpush.msra.mxu0 0.0
        %729 = vmatpush.msra.mxu0 0.0
        %730 = vmatpush.msra.mxu0 0.0
        %731 = vmatpush.msra.mxu0 0.0
        %732 = vmatpush.msra.mxu0 %v713
        %733 = vmatmul.f32.gmra.mxu0 %v715
        %v734 = vpop.f32.mrf.mxu0
        %v735 = vadd.f32 0.0, %v734
        %736 = vdwg.mxu0
        %737 = vrot.lane.b32.xlu0 %v574, 64
        %v738 = vpop.permute.xlu0 %737
        %741 = vrot.lane.b32.xlu0 %v735, 64
        %v742 = vpop.permute.xlu0 %741
        %v744 = vsel %vm356, %v652, %v738
        %v745 = vsel %vm352, %v744, %v742
        %v746 = vsel %vm354, %v745, %v657
        %v747 = vld [vmem:[%s6] sm:$0xff]
        %v748 = vld [vmem:[%s6 + $0x8] sm:$0xff]
        %v749 = vld [vmem:[%s6 + $0x10] sm:$0xff]
        %v750 = vld [vmem:[%s6 + $0x18] sm:$0xff]
        %v751 = vld [vmem:[%s6 + $0x20] sm:$0xff]
        %v752 = vld [vmem:[%s6 + $0x28] sm:$0xff]
        %v753 = vld [vmem:[%s6 + $0x30] sm:$0xff]
        %v754 = vld [vmem:[%s6 + $0x38] sm:$0xff]
        %v755 = vld [vmem:[%s6 + $0x40] sm:$0xff]
        %v756 = vld [vmem:[%s6 + $0x48] sm:$0xff]
        %v757 = vld [vmem:[%s6 + $0x50] sm:$0xff]
        %v758 = vld [vmem:[%s6 + $0x58] sm:$0xff]
        %v759 = vld [vmem:[%s6 + $0x60] sm:$0xff]
        %v760 = vld [vmem:[%s6 + $0x68] sm:$0xff]
        %v761 = vld [vmem:[%s6 + $0x70] sm:$0xff]
        %v762 = vld [vmem:[%s6 + $0x78] sm:$0xff]
        %v763 = vld [vmem:[%s6 + $0x80] sm:$0x1]
        %764 = vmatpush.msra.mxu0 %v762
        %765 = vmatpush.msra.mxu0 %v761
        %766 = vmatpush.msra.mxu0 %v760
        %767 = vmatpush.msra.mxu0 %v759
        %768 = vmatpush.msra.mxu0 %v758
        %769 = vmatpush.msra.mxu0 %v757
        %770 = vmatpush.msra.mxu0 %v756
        %771 = vmatpush.msra.mxu0 %v755
        %772 = vmatpush.msra.mxu0 %v754
        %773 = vmatpush.msra.mxu0 %v753
        %774 = vmatpush.msra.mxu0 %v752
        %775 = vmatpush.msra.mxu0 %v751
        %776 = vmatpush.msra.mxu0 %v750
        %777 = vmatpush.msra.mxu0 %v749
        %778 = vmatpush.msra.mxu0 %v748
        %779 = vmatpush.msra.mxu0 %v747
        %780 = vmatmul.f32.gmra.mxu0 %v746
        %v781 = vpop.f32.mrf.mxu0
        %v782 = vadd.f32 %v763, %v781
        %783 = vdwg.mxu0
        %v784 = vtanh.pop %v782
        %v785 = vld [vmem:[#allocation6] sm:$0xff]
        %v786 = vld [vmem:[#allocation6 + $0x8] sm:$0xff]
        %v787 = vld [vmem:[#allocation6 + $0x10] sm:$0xff]
        %v788 = vld [vmem:[#allocation6 + $0x18] sm:$0xff]
        %v789 = vld [vmem:[#allocation6 + $0x20] sm:$0xff]
        %v790 = vld [vmem:[#allocation6 + $0x28] sm:$0xff]
        %v791 = vld [vmem:[#allocation6 + $0x30] sm:$0xff]
        %v792 = vld [vmem:[#allocation6 + $0x38] sm:$0xff]
        %v793 = vld [vmem:[#allocation6 + $0x40] sm:$0xff]
        %v794 = vld [vmem:[#allocation6 + $0x48] sm:$0xff]
        %v795 = vld [vmem:[#allocation6 + $0x50] sm:$0xff]
        %v796 = vld [vmem:[#allocation6 + $0x58] sm:$0xff]
        %v797 = vld [vmem:[#allocation6 + $0x60] sm:$0xff]
        %v798 = vld [vmem:[#allocation6 + $0x68] sm:$0xff]
        %v799 = vld [vmem:[#allocation6 + $0x70] sm:$0xff]
        %v800 = vld [vmem:[#allocation6 + $0x78] sm:$0xff]
        %s801 = scalar_lea.vmem [#allocation6], 128
        %v802 = vld [vmem:[%s801] ss:$8 sm:$0x3]
        %v804 = vperm.slane %v802, 0
        %v805 = vperm.slane %v802, 1
        %v809 = vsel %vm352, %v784, 0
        %811 = vmatpush.msra.mxu0 0.0
        %812 = vmatpush.msra.mxu0 0.0
        %813 = vmatpush.msra.mxu0 0.0
        %814 = vmatpush.msra.mxu0 0.0
        %815 = vmatpush.msra.mxu0 0.0
        %816 = vmatpush.msra.mxu0 0.0
        %817 = vmatpush.msra.mxu0 0.0
        %818 = vmatpush.msra.mxu0 0.0
        %819 = vmatpush.msra.mxu0 %v799
        %820 = vmatpush.msra.mxu0 %v797
        %821 = vmatpush.msra.mxu0 %v795
        %822 = vmatpush.msra.mxu0 %v793
        %823 = vmatpush.msra.mxu0 %v791
        %824 = vmatpush.msra.mxu0 %v789
        %825 = vmatpush.msra.mxu0 %v787
        %826 = vmatpush.msra.mxu0 %v785
        %827 = vmatmul.f32.gmra.mxu0 %v809
        %v828 = vpop.f32.mrf.mxu0
        %v829 = vadd.f32 %v804, %v828
        %830 = vdwg.mxu0
        %831 = vmatpush.msra.mxu0 0.0
        %832 = vmatpush.msra.mxu0 0.0
        %833 = vmatpush.msra.mxu0 0.0
        %834 = vmatpush.msra.mxu0 0.0
        %835 = vmatpush.msra.mxu0 0.0
        %836 = vmatpush.msra.mxu0 0.0
        %837 = vmatpush.msra.mxu0 0.0
        %838 = vmatpush.msra.mxu0 0.0
        %839 = vmatpush.msra.mxu0 %v800
        %840 = vmatpush.msra.mxu0 %v798
        %841 = vmatpush.msra.mxu0 %v796
        %842 = vmatpush.msra.mxu0 %v794
        %843 = vmatpush.msra.mxu0 %v792
        %844 = vmatpush.msra.mxu0 %v790
        %845 = vmatpush.msra.mxu0 %v788
        %846 = vmatpush.msra.mxu0 %v786
        %847 = vmatmul.f32.gmra.mxu0 %v809
        %v848 = vpop.f32.mrf.mxu0
        %v849 = vadd.f32 %v805, %v848
        %850 = vdwg.mxu0
        %vm851 = vcmask 1040384
        %v852 = vsel %vm851, %v829, -inf
        %853 = vmax.xlane.f32.xlu0 %v852
        %v854 = vpop.xlane.xlu0 %853
        %v855 = vsub.f32 %v829, %v854
        %v856 = vmul.f32 %v855, 1.442695
        %v857 = vpow.pop %v856
        %v858 = vsel %vm851, %v857, 0.0
        %859 = vadd.xlane.f32.xlu0 %v858
        %v860 = vpop.xlane.xlu0 %859
        %v861 = vlog2.pop %v860
        %v862 = vmul.f32 %v861, 0.6931472
        %v863 = vadd.f32 %v862, %v854
        %v864 = vsub.f32 %v829, %v863
        %v865 = vadd.f32 %v864, 0.0
        %v866 = vsel %vm851, %v849, -inf
        %867 = vmax.xlane.f32.xlu0 %v866
        %v868 = vpop.xlane.xlu0 %867
        %v869 = vsub.f32 %v849, %v868
        %v870 = vmul.f32 %v869, 1.442695
        %v871 = vpow.pop %v870
        %v872 = vsel %vm851, %v871, 0.0
        %873 = vadd.xlane.f32.xlu0 %v872
        %v874 = vpop.xlane.xlu0 %873
        %v875 = vlog2.pop %v874
        %v876 = vmul.f32 %v875, 0.6931472
        %v877 = vadd.f32 %v876, %v868
        %v878 = vsub.f32 %v849, %v877
        %v879 = vadd.f32 %v865, %v878
        %v880 = vmul.f32 %v879, 0.5
        %v881 = vld [vmem:[#allocation6 + $0x81] ss:$0 sm:$0xff]
        %s882 = smul.u32 %s30, 128
        %s883 = sadd.s32 %s882, 1
        %s884 = sld [smem:[#allocation5 + %s883]]
        %v885 = vlaneseq
        %v886 = vand.u32 %v885, 127
        %v887 = vstv %s884
        %vm888 = vcmp.eq.s32.totalorder %v886, %v887
        %v889 = vadd.f32 %v880, %v881
        %v890 = vsel %vm888, %v889, 0.0
        %v891 = vsel %vm851, %v890, 0.0
        %892 = vadd.xlane.f32.xlu0 %v891
        %v893 = vpop.xlane.xlu0 %892
        %v894 = vstv %s30
        %vm895 = vcmp.eq.s32.totalorder %v886, %v894
        %v896 = vld [vmem:[#allocation3] sm:$0x1]
        %v897 = vsel %vm895, %v893, %v896
        %898 = vst [vmem:[#allocation3] sm:$0x1] %v897
        %899 = vrot.lane.b32.xlu0 %v784, 32
        %v900 = vpop.permute.xlu0 %899
        %v902 = vsel %vm356, %v784, %v738
        %v903 = vsel %vm352, %v902, %v900
        %v904 = vsel %vm354, %v903, %v657
        %v907 = vrot.slane %v568, 7
        %v908 = vsel %vm851, %v904, %v907
        %v910 = vlaneseq
        %vm911 = vcmp.ge.s32.totalorder %v910, 0
        %vm912 = vcmp.lt.s32.totalorder %v910, 192
        %vm913 = vmand %vm911, %vm912
        %914 = vst.msk [vmem:[#allocation2] sm:$0x3] %vm913, %v908
        %p915 = scmp.eq.s32.totalorder %s30, 7
        // Predicated region
        $region57: #{known_output_decoder_sequence.1} parent=47 // pred_check
          %p916 = pneg %p915
        $region58: #{known_output_decoder_sequence.1} parent=47 // pred_check_branch
          %918 = sbr.rel (%p916) target = $region60
        $region59: #{known_output_decoder_sequence.1} parent=47 // pred_region
          %v919 = vld [vmem:[#allocation3] sm:$0x1]
          %920 = vst [vmem:[%s8] sm:$0x1] %v919
          %v921 = vld [vmem:[#allocation2] sm:$0x3]
          %922 = vst.msk [vmem:[%s9] sm:$0x3] %vm913, %v921
        $region60: #{known_output_decoder_sequence.1} parent=47 // pred_fallthru
          _
        // Predicated region
        $region61: #{known_output_decoder_sequence.1} parent=47 // pred_check
          %p923 = pneg %p199
        $region62: #{known_output_decoder_sequence.1} parent=47 // pred_check_branch
          %925 = sbr.rel (%p923) target = $region64
        $region63: #{known_output_decoder_sequence.1} parent=47 // pred_region
          _
        $region64: #{known_output_decoder_sequence.1} parent=47 // pred_fallthru
          _
        // Predicated region
        $region65: #{known_output_decoder_sequence.1} parent=47 // pred_check
          %p926 = pneg %p220
        $region66: #{known_output_decoder_sequence.1} parent=47 // pred_check_branch
          %928 = sbr.rel (%p926) target = $region68
        $region67: #{known_output_decoder_sequence.1} parent=47 // pred_region
          _
        $region68: #{known_output_decoder_sequence.1} parent=47 // pred_fallthru
          _
        // Predicated region
        $region69: #{known_output_decoder_sequence.1} parent=47 // pred_check
          %p929 = pneg %p199
        $region70: #{known_output_decoder_sequence.1} parent=47 // pred_check_branch
          %931 = sbr.rel (%p929) target = $region72
        $region71: #{known_output_decoder_sequence.1} parent=47 // pred_region
          _
        $region72: #{known_output_decoder_sequence.1} parent=47 // pred_fallthru
          _
        // Predicated region
        $region73: #{known_output_decoder_sequence.1} parent=47 // pred_check
          %p932 = pneg %p220
        $region74: #{known_output_decoder_sequence.1} parent=47 // pred_check_branch
          %934 = sbr.rel (%p932) target = $region76
        $region75: #{known_output_decoder_sequence.1} parent=47 // pred_region
          _
        $region76: #{known_output_decoder_sequence.1} parent=47 // pred_fallthru
          _
      $region48: #{known_output_decoder_sequence.1} parent=5 // pred_fallthru
        _
      %p935 = scmp.le.s32.totalorder 2, %s25
      // Predicated region
      $region77: #{known_output_decoder_sequence.1} parent=5 // pred_check
        %p936 = pneg %p935
      $region78: #{known_output_decoder_sequence.1} parent=5 // pred_check_branch
        %938 = sbr.rel (%p936) target = $region80
      $region79: #{known_output_decoder_sequence.1} parent=5 // pred_region
        %s939 = ssub.s32 %s25, 2
      $region80: #{known_output_decoder_sequence.1} parent=5 // pred_fallthru
        _
    $region6: #{known_output_decoder_sequence.1} parent=1 // loop_footer
      %s29 = sadd.s32 1, %s25
    $region7: #{known_output_decoder_sequence.1} parent=1 // loop_footer_branch
      %24 = sbr.rel target = $region3
    $region8: #{known_output_decoder_sequence.1} parent=1 // loop_exit
      _
    %940 = vsyncpa [#allocation7], 1
    %s941 = scalar_lea.sflag [#allocation7], 1
    %942 = vsyncpa %s941, 1

</llo_original>
